<compile_context>
chip_gen: v7x
topology: tpu7x:2x2x1
jax: 0.10.0
libtpu: 0.0.40
codegen_flags: <defaults>
</compile_context>

<pallas_src>
import jax
import jax.numpy as jnp
from jax.experimental import pallas as pl
from jax.experimental.pallas import tpu as pltpu


def _deconv_bn_relu_kernel(x_ref, h_ref, w0_ref, w1_ref, w2_ref, w3_ref,
                           b_ref, o_ref):
    # x_ref : (1, tH, W, Cin)    bf16 input rows of this tile (Cin on lanes)
    # h_ref : (1, 1,  W, Cin)    bf16 halo row (first row of next tile / zeros)
    # w0_ref: (Cin, 4*Cout)      bf16 taps for X   -> [oee|oeo|ooe|ooo]
    # w1_ref: (Cin, 2*Cout)      bf16 taps for XR  -> [oeo|ooo]
    # w2_ref: (Cin, 2*Cout)      bf16 taps for XD  -> [ooe|ooo]
    # w3_ref: (Cin, Cout)        bf16 taps for XRD -> [ooo]
    # b_ref : (1, 4*Cout)        f32 folded bias (tiled over the 4 sub-pixels)
    # o_ref : (1, tH*W, 4*Cout)  lane-dense sub-pixel output
    _, tH, W, Cin = x_ref.shape
    Cout = w3_ref.shape[-1]
    tHW = tH * W

    x = x_ref[0]                                       # (tH, W, Cin) bf16
    halo = h_ref[0]                                    # (1,  W, Cin) bf16

    # Shifted copies: xr[i,j]=x[i,j+1]; xd[i,j]=x[i+1,j]; xrd[i,j]=x[i+1,j+1]
    zero_col = jnp.zeros((tH, 1, Cin), x.dtype)
    xr = jnp.concatenate([x[:, 1:, :], zero_col], axis=1)
    if tH > 1:
        xd = jnp.concatenate([x[1:, :, :], halo], axis=0)
    else:
        xd = halo
    xrd = jnp.concatenate([xd[:, 1:, :], zero_col], axis=1)

    X = x.reshape(tHW, Cin)
    XR = xr.reshape(tHW, Cin)
    XD = xd.reshape(tHW, Cin)
    XRD = xrd.reshape(tHW, Cin)

    # Four wide-N MXU matmuls (bf16 operands, f32 accumulation).
    p0 = jnp.dot(X, w0_ref[...], preferred_element_type=jnp.float32)
    p1 = jnp.dot(XR, w1_ref[...], preferred_element_type=jnp.float32)
    p2 = jnp.dot(XD, w2_ref[...], preferred_element_type=jnp.float32)
    p3 = jnp.dot(XRD, w3_ref[...], preferred_element_type=jnp.float32)

    # Sub-pixel decomposition of ConvTranspose2d(k=3, s=2, p=1, op=1):
    #   out[2i,  2j  ] = X   @ A11
    #   out[2i,  2j+1] = XR  @ A10 + X  @ A12
    #   out[2i+1,2j  ] = XD  @ A01 + X  @ A21
    #   out[2i+1,2j+1] = XRD @ A00 + XD @ A02 + XR @ A20 + X @ A22
    oee = p0[:, 0 * Cout:1 * Cout]
    oeo = p0[:, 1 * Cout:2 * Cout] + p1[:, :Cout]
    ooe = p0[:, 2 * Cout:3 * Cout] + p2[:, :Cout]
    ooo = p0[:, 3 * Cout:4 * Cout] + p1[:, Cout:] + p2[:, Cout:] + p3

    y = jnp.concatenate([oee, oeo, ooe, ooo], axis=-1)   # (tHW, 4*Cout) f32
    y = jnp.maximum(y + b_ref[...], 0.0)                 # single bias add + ReLU
    o_ref[0] = y.astype(o_ref.dtype)                     # one dense store


def _choose_tile_h(H, W, Cin, Cout, out_itemsize, budget_bytes=24 << 20):
    """Pick an H tile whose per-step working set fits ~budget_bytes."""
    per_row = W * (
        2 * Cin * 2                      # x tile (bf16, double-buffered)
        + 3 * Cin * 2                    # shifted copies (bf16)
        + 9 * Cout * 4                   # f32 matmul partials
        + 4 * Cout * 4                   # assembled f32 epilogue
        + 2 * 4 * Cout * out_itemsize    # output tile (double-buffered)
    )
    tile = int(max(1, min(H, budget_bytes // max(per_row, 1))))
    # Need tile | H and a sublane-aligned output block (tile*W % 8 == 0).
    while tile > 1 and (H % tile != 0 or (tile * W) % 8 != 0):
        tile -= 1
    if tile < 2 or (tile * W) % 8 != 0:
        tile = H  # whole-image fallback (full-extent blocks are always legal)
    # TODO(synk): for huge prime H, add padding instead of falling back to H.
    return tile


def deconv_bn_act(x_nchw, deconv_w, deconv_b, bn_gamma, bn_beta,
                  bn_mean, bn_var, *, scale_factor=2, eps=1e-5,
                  out_dtype=jnp.bfloat16, tile_h=None):
    """DeConvBNAct forward (eval mode, act_type='relu').

    x_nchw:   (N, Cin, H, W)
    deconv_w: (Cin, Cout, 3, 3)  PyTorch ConvTranspose2d weight layout
    deconv_b: (Cout,)            ConvTranspose2d bias
    bn_*:     (Cout,)            BatchNorm2d affine params / running stats
    Returns:  (N, Cout, 2H, 2W) in `out_dtype`
    """
    assert scale_factor == 2, "only scale_factor=2 (module default) supported"
    N, Cin, H, W = x_nchw.shape
    Cout = deconv_w.shape[1]
    out_itemsize = jnp.dtype(out_dtype).itemsize

    # Fold BatchNorm (eval) + conv bias into taps / one bias vector (in f32):
    #   y = scale * (conv + b - mean) + beta,  scale = gamma / sqrt(var + eps)
    bn_scale = bn_gamma / jnp.sqrt(bn_var + eps)                      # (Cout,)
    w_folded = deconv_w.astype(jnp.float32) * bn_scale[None, :, None, None]
    bias = ((deconv_b - bn_mean) * bn_scale + bn_beta).astype(jnp.float32)

    # Group taps per shifted input, concatenated along Cout (wide-N matmuls),
    # then cast the matmul operands to bf16.
    def A(ky, kx):
        return w_folded[:, :, ky, kx]                                 # (Cin, Cout)

    w0 = jnp.concatenate([A(1, 1), A(1, 2), A(2, 1), A(2, 2)], axis=1)  # for X
    w1 = jnp.concatenate([A(1, 0), A(2, 0)], axis=1)                    # for XR
    w2 = jnp.concatenate([A(0, 1), A(0, 2)], axis=1)                    # for XD
    w3 = A(0, 0)                                                        # for XRD
    w0, w1, w2, w3 = (t.astype(jnp.bfloat16) for t in (w0, w1, w2, w3))
    bias4 = jnp.tile(bias, 4).reshape(1, 4 * Cout)                      # f32

    # NCHW -> NHWC (channels on lanes), bf16. Only input-side layout pass.
    x = jnp.transpose(x_nchw.astype(jnp.bfloat16), (0, 2, 3, 1))        # (N,H,W,Cin)

    # Spatial tiling over H; the 1-row halo is a tiny side input.
    if tile_h is None:
        tile_h = _choose_tile_h(H, W, Cin, Cout, out_itemsize)
    assert H % tile_h == 0 and (tile_h == H or (tile_h * W) % 8 == 0), tile_h
    nH = H // tile_h
    if nH > 1:
        halo = jnp.concatenate(
            [x[:, tile_h::tile_h, :, :],
             jnp.zeros((N, 1, W, Cin), x.dtype)], axis=1)               # (N,nH,W,Cin)
    else:
        halo = jnp.zeros((N, 1, W, Cin), x.dtype)

    cost = pl.CostEstimate(
        flops=2 * 9 * N * H * W * Cin * Cout,
        transcendentals=0,
        bytes_accessed=(2 * N * H * W * Cin + 2 * N * nH * W * Cin
                        + 2 * 9 * Cin * Cout + 4 * 4 * Cout
                        + out_itemsize * N * H * W * 4 * Cout),
    )

    sub = pl.pallas_call(
        _deconv_bn_relu_kernel,
        out_shape=jax.ShapeDtypeStruct((N, H * W, 4 * Cout), out_dtype),
        grid_spec=pltpu.PrefetchScalarGridSpec(
            num_scalar_prefetch=0,
            grid=(N, nH),
            in_specs=[
                pl.BlockSpec((1, tile_h, W, Cin), lambda n, i: (n, i, 0, 0)),
                pl.BlockSpec((1, 1, W, Cin), lambda n, i: (n, i, 0, 0)),
                pl.BlockSpec((Cin, 4 * Cout), lambda n, i: (0, 0)),
                pl.BlockSpec((Cin, 2 * Cout), lambda n, i: (0, 0)),
                pl.BlockSpec((Cin, 2 * Cout), lambda n, i: (0, 0)),
                pl.BlockSpec((Cin, Cout), lambda n, i: (0, 0)),
                pl.BlockSpec((1, 4 * Cout), lambda n, i: (0, 0)),
            ],
            out_specs=pl.BlockSpec((1, tile_h * W, 4 * Cout),
                                   lambda n, i: (n, i, 0)),
        ),
        compiler_params=pltpu.CompilerParams(
            dimension_semantics=("parallel", "parallel"),
            vmem_limit_bytes=48 * 1024 * 1024),
        cost_estimate=cost,
    )(x, halo, w0, w1, w2, w3, bias4)

    # Depth-to-space + back to NCHW in a single (out_dtype) transpose:
    #   sub[n, i*W + j, (2r + c)*Cout + co] == out[n, co, 2i + r, 2j + c]
    out = sub.reshape(N, H, W, 2, 2, Cout)
    out = jnp.transpose(out, (0, 5, 1, 3, 2, 4)).reshape(N, Cout, 2 * H, 2 * W)
    return out


def _reference(x_nchw, w, b, gamma, beta, mean, var, eps=1e-5):
    # ConvTranspose2d(k=3, s=2, p=1, op=1) == conv with lhs_dilation=2,
    # padding (k-1-p, k-1-p+op) = (1, 2), kernel flipped and IO-transposed.
    rhs = jnp.transpose(w, (1, 0, 2, 3))[:, :, ::-1, ::-1]       # (Cout, Cin, 3, 3)
    y = jax.lax.conv_general_dilated(
        x_nchw, rhs, window_strides=(1, 1), padding=((1, 2), (1, 2)),
        lhs_dilation=(2, 2), rhs_dilation=(1, 1),
        dimension_numbers=('NCHW', 'OIHW', 'NCHW'),
        precision=jax.lax.Precision.HIGHEST)
    y = y + b[None, :, None, None]
    y = (y - mean[None, :, None, None]) / jnp.sqrt(var[None, :, None, None] + eps)
    y = y * gamma[None, :, None, None] + beta[None, :, None, None]
    return jnp.maximum(y, 0.0)


if __name__ == "__main__":
    N, Cin, Cout, H, W = 2, 4, 8, 16, 16
    key = jax.random.PRNGKey(0)
    kx, kw, kb, kg, kbe, km, kv = jax.random.split(key, 7)

    x = jax.random.normal(kx, (N, Cin, H, W), dtype=jnp.float32)
    w = jax.random.normal(kw, (Cin, Cout, 3, 3), dtype=jnp.float32) * 0.1
    b = jax.random.normal(kb, (Cout,), dtype=jnp.float32) * 0.1
    gamma = 1.0 + 0.1 * jax.random.normal(kg, (Cout,), dtype=jnp.float32)
    beta = 0.1 * jax.random.normal(kbe, (Cout,), dtype=jnp.float32)
    mean = 0.1 * jax.random.normal(km, (Cout,), dtype=jnp.float32)
    var = jax.random.uniform(kv, (Cout,), dtype=jnp.float32,
                             minval=0.5, maxval=1.5)

    ref = _reference(x, w, b, gamma, beta, mean, var)

    # Auto-sized tile (whole image at this small size).
    out = deconv_bn_act(x, w, b, gamma, beta, mean, var)
    out = jax.block_until_ready(out)
    assert out.shape == (N, Cout, 2 * H, 2 * W), out.shape
    err = float(jnp.max(jnp.abs(out.astype(jnp.float32) - ref)))
    assert jnp.allclose(out.astype(jnp.float32), ref, atol=2e-2, rtol=2e-2), err

    # Explicitly tiled run (grid=(N, 2)) to exercise the halo path.
    out_t = deconv_bn_act(x, w, b, gamma, beta, mean, var, tile_h=8)
    out_t = jax.block_until_ready(out_t)
    err_t = float(jnp.max(jnp.abs(out_t.astype(jnp.float32) - ref)))
    assert jnp.allclose(out_t.astype(jnp.float32), ref, atol=2e-2, rtol=2e-2), err_t

    print("KERNEL_OK")
</pallas_src>

<mosaic_0001>
module attributes {stable_mosaic.version = 11 : i64} {
  func.func @_deconv_bn_relu_kernel(%arg0: i32, %arg1: i32, %arg2: memref<1x16x16x4xbf16, #tpu.memory_space<vmem>>, %arg3: memref<1x1x16x4xbf16, #tpu.memory_space<vmem>>, %arg4: memref<4x32xbf16, #tpu.memory_space<vmem>>, %arg5: memref<4x16xbf16, #tpu.memory_space<vmem>>, %arg6: memref<4x16xbf16, #tpu.memory_space<vmem>>, %arg7: memref<4x8xbf16, #tpu.memory_space<vmem>>, %arg8: memref<1x32xf32, #tpu.memory_space<vmem>>, %arg9: memref<1x256x32xbf16, #tpu.memory_space<vmem>>) attributes {dimension_semantics = [#tpu.dimension_semantics<parallel>, #tpu.dimension_semantics<parallel>], iteration_bounds = array<i64: 2, 1>, scalar_prefetch = 0 : i64, scratch_operands = 0 : i64, tpu.core_type = #tpu.core_type<tc>, window_params = [{transform_indices = @transform_0, window_bounds = array<i64: 1, 16, 16, 4>}, {transform_indices = @transform_1, window_bounds = array<i64: 1, 1, 16, 4>}, {pipeline_mode = #tpu.pipeline_mode<synchronous>, transform_indices = @transform_2, window_bounds = array<i64: 4, 32>}, {pipeline_mode = #tpu.pipeline_mode<synchronous>, transform_indices = @transform_3, window_bounds = array<i64: 4, 16>}, {pipeline_mode = #tpu.pipeline_mode<synchronous>, transform_indices = @transform_4, window_bounds = array<i64: 4, 16>}, {pipeline_mode = #tpu.pipeline_mode<synchronous>, transform_indices = @transform_5, window_bounds = array<i64: 4, 8>}, {pipeline_mode = #tpu.pipeline_mode<synchronous>, transform_indices = @transform_6, window_bounds = array<i64: 1, 32>}, {transform_indices = @transform_7, window_bounds = array<i64: 1, 256, 32>}]} {
    %c0 = arith.constant 0 : index
    %c0_0 = arith.constant 0 : index
    %c0_1 = arith.constant 0 : index
    %c0_2 = arith.constant 0 : index
    %0 = vector.load %arg2[%c0, %c0_0, %c0_1, %c0_2] : memref<1x16x16x4xbf16, #tpu.memory_space<vmem>>, vector<1x16x16x4xbf16>
    %1 = vector.shape_cast %0 : vector<1x16x16x4xbf16> to vector<16x16x4xbf16>
    %c0_3 = arith.constant 0 : index
    %c0_4 = arith.constant 0 : index
    %c0_5 = arith.constant 0 : index
    %c0_6 = arith.constant 0 : index
    %2 = vector.load %arg3[%c0_3, %c0_4, %c0_5, %c0_6] : memref<1x1x16x4xbf16, #tpu.memory_space<vmem>>, vector<1x1x16x4xbf16>
    %3 = vector.shape_cast %2 : vector<1x1x16x4xbf16> to vector<1x16x4xbf16>
    %cst = arith.constant 0.000000e+00 : bf16
    %4 = vector.broadcast %cst : bf16 to vector<16x1x4xbf16>
    %5 = vector.extract_strided_slice %1 {offsets = [0, 1, 0], sizes = [16, 15, 4], strides = [1, 1, 1]} : vector<16x16x4xbf16> to vector<16x15x4xbf16>
    %6 = tpu.concatenate %5, %4 in 1 : vector<16x15x4xbf16>, vector<16x1x4xbf16> -> vector<16x16x4xbf16>
    %7 = vector.extract_strided_slice %1 {offsets = [1, 0, 0], sizes = [15, 16, 4], strides = [1, 1, 1]} : vector<16x16x4xbf16> to vector<15x16x4xbf16>
    %8 = tpu.concatenate %7, %3 in 0 : vector<15x16x4xbf16>, vector<1x16x4xbf16> -> vector<16x16x4xbf16>
    %9 = vector.extract_strided_slice %8 {offsets = [0, 1, 0], sizes = [16, 15, 4], strides = [1, 1, 1]} : vector<16x16x4xbf16> to vector<16x15x4xbf16>
    %10 = tpu.concatenate %9, %4 in 1 : vector<16x15x4xbf16>, vector<16x1x4xbf16> -> vector<16x16x4xbf16>
    %11 = vector.shape_cast %1 : vector<16x16x4xbf16> to vector<256x4xbf16>
    %12 = vector.shape_cast %6 : vector<16x16x4xbf16> to vector<256x4xbf16>
    %13 = vector.shape_cast %8 : vector<16x16x4xbf16> to vector<256x4xbf16>
    %14 = vector.shape_cast %10 : vector<16x16x4xbf16> to vector<256x4xbf16>
    %c0_7 = arith.constant 0 : index
    %c0_8 = arith.constant 0 : index
    %15 = vector.load %arg4[%c0_7, %c0_8] : memref<4x32xbf16, #tpu.memory_space<vmem>>, vector<4x32xbf16>
    %cst_9 = arith.constant dense<0.000000e+00> : vector<256x32xf32>
    %16 = tpu.matmul %11, %15, %cst_9 {dimension_numbers = #tpu.dot_dimension_numbers<[1], [0], [0], [1], [0, 0, 1, 1], [], []>} : vector<256x4xbf16>, vector<4x32xbf16>, vector<256x32xf32> -> vector<256x32xf32>
    %c0_10 = arith.constant 0 : index
    %c0_11 = arith.constant 0 : index
    %17 = vector.load %arg5[%c0_10, %c0_11] : memref<4x16xbf16, #tpu.memory_space<vmem>>, vector<4x16xbf16>
    %cst_12 = arith.constant dense<0.000000e+00> : vector<256x16xf32>
    %18 = tpu.matmul %12, %17, %cst_12 {dimension_numbers = #tpu.dot_dimension_numbers<[1], [0], [0], [1], [0, 0, 1, 1], [], []>} : vector<256x4xbf16>, vector<4x16xbf16>, vector<256x16xf32> -> vector<256x16xf32>
    %c0_13 = arith.constant 0 : index
    %c0_14 = arith.constant 0 : index
    %19 = vector.load %arg6[%c0_13, %c0_14] : memref<4x16xbf16, #tpu.memory_space<vmem>>, vector<4x16xbf16>
    %cst_15 = arith.constant dense<0.000000e+00> : vector<256x16xf32>
    %20 = tpu.matmul %13, %19, %cst_15 {dimension_numbers = #tpu.dot_dimension_numbers<[1], [0], [0], [1], [0, 0, 1, 1], [], []>} : vector<256x4xbf16>, vector<4x16xbf16>, vector<256x16xf32> -> vector<256x16xf32>
    %c0_16 = arith.constant 0 : index
    %c0_17 = arith.constant 0 : index
    %21 = vector.load %arg7[%c0_16, %c0_17] : memref<4x8xbf16, #tpu.memory_space<vmem>>, vector<4x8xbf16>
    %cst_18 = arith.constant dense<0.000000e+00> : vector<256x8xf32>
    %22 = tpu.matmul %14, %21, %cst_18 {dimension_numbers = #tpu.dot_dimension_numbers<[1], [0], [0], [1], [0, 0, 1, 1], [], []>} : vector<256x4xbf16>, vector<4x8xbf16>, vector<256x8xf32> -> vector<256x8xf32>
    %23 = vector.extract_strided_slice %16 {offsets = [0, 0], sizes = [256, 8], strides = [1, 1]} : vector<256x32xf32> to vector<256x8xf32>
    %24 = vector.extract_strided_slice %16 {offsets = [0, 8], sizes = [256, 8], strides = [1, 1]} : vector<256x32xf32> to vector<256x8xf32>
    %25 = vector.extract_strided_slice %18 {offsets = [0, 0], sizes = [256, 8], strides = [1, 1]} : vector<256x16xf32> to vector<256x8xf32>
    %26 = arith.addf %24, %25 : vector<256x8xf32>
    %27 = vector.extract_strided_slice %16 {offsets = [0, 16], sizes = [256, 8], strides = [1, 1]} : vector<256x32xf32> to vector<256x8xf32>
    %28 = vector.extract_strided_slice %20 {offsets = [0, 0], sizes = [256, 8], strides = [1, 1]} : vector<256x16xf32> to vector<256x8xf32>
    %29 = arith.addf %27, %28 : vector<256x8xf32>
    %30 = vector.extract_strided_slice %16 {offsets = [0, 24], sizes = [256, 8], strides = [1, 1]} : vector<256x32xf32> to vector<256x8xf32>
    %31 = vector.extract_strided_slice %18 {offsets = [0, 8], sizes = [256, 8], strides = [1, 1]} : vector<256x16xf32> to vector<256x8xf32>
    %32 = arith.addf %30, %31 : vector<256x8xf32>
    %33 = vector.extract_strided_slice %20 {offsets = [0, 8], sizes = [256, 8], strides = [1, 1]} : vector<256x16xf32> to vector<256x8xf32>
    %34 = arith.addf %32, %33 : vector<256x8xf32>
    %35 = arith.addf %34, %22 : vector<256x8xf32>
    %36 = tpu.concatenate %23, %26, %29, %35 in 1 : vector<256x8xf32>, vector<256x8xf32>, vector<256x8xf32>, vector<256x8xf32> -> vector<256x32xf32>
    %c0_19 = arith.constant 0 : index
    %c0_20 = arith.constant 0 : index
    %37 = vector.load %arg8[%c0_19, %c0_20] : memref<1x32xf32, #tpu.memory_space<vmem>>, vector<1x32xf32>
    %38 = vector.broadcast %37 : vector<1x32xf32> to vector<256x32xf32>
    %39 = arith.addf %36, %38 : vector<256x32xf32>
    %cst_21 = arith.constant 0.000000e+00 : f32
    %40 = vector.broadcast %cst_21 : f32 to vector<256x32xf32>
    %41 = arith.maximumf %39, %40 : vector<256x32xf32>
    %42 = arith.truncf %41 : vector<256x32xf32> to vector<256x32xbf16>
    %c0_22 = arith.constant 0 : index
    %c0_23 = arith.constant 0 : index
    %c0_24 = arith.constant 0 : index
    %43 = vector.load %arg9[%c0_22, %c0_23, %c0_24] : memref<1x256x32xbf16, #tpu.memory_space<vmem>>, vector<1x256x32xbf16>
    %44 = vector.shape_cast %43 : vector<1x256x32xbf16> to vector<256x32xbf16>
    %45 = vector.shape_cast %42 : vector<256x32xbf16> to vector<1x256x32xbf16>
    tpu.vector_store %arg9[%c0_22, %c0_23, %c0_24], %45 {strides = array<i32>} : memref<1x256x32xbf16, #tpu.memory_space<vmem>>, vector<1x256x32xbf16>,
    return
  }
  func.func @transform_0(%arg0: i32, %arg1: i32) -> (i32, i32, i32, i32) {
    %c0_i32 = arith.constant 0 : i32
    %c0_i32_0 = arith.constant 0 : i32
    %c0_i32_1 = arith.constant 0 : i32
    return %arg0, %arg1, %c0_i32, %c0_i32_0 : i32, i32, i32, i32
  }
  func.func @transform_1(%arg0: i32, %arg1: i32) -> (i32, i32, i32, i32) {
    %c0_i32 = arith.constant 0 : i32
    %c0_i32_0 = arith.constant 0 : i32
    %c0_i32_1 = arith.constant 0 : i32
    return %arg0, %arg1, %c0_i32, %c0_i32_0 : i32, i32, i32, i32
  }
  func.func @transform_2(%arg0: i32, %arg1: i32) -> (i32, i32) {
    %c0_i32 = arith.constant 0 : i32
    %c0_i32_0 = arith.constant 0 : i32
    %c0_i32_1 = arith.constant 0 : i32
    return %c0_i32, %c0_i32_0 : i32, i32
  }
  func.func @transform_3(%arg0: i32, %arg1: i32) -> (i32, i32) {
    %c0_i32 = arith.constant 0 : i32
    %c0_i32_0 = arith.constant 0 : i32
    %c0_i32_1 = arith.constant 0 : i32
    return %c0_i32, %c0_i32_0 : i32, i32
  }
  func.func @transform_4(%arg0: i32, %arg1: i32) -> (i32, i32) {
    %c0_i32 = arith.constant 0 : i32
    %c0_i32_0 = arith.constant 0 : i32
    %c0_i32_1 = arith.constant 0 : i32
    return %c0_i32, %c0_i32_0 : i32, i32
  }
  func.func @transform_5(%arg0: i32, %arg1: i32) -> (i32, i32) {
    %c0_i32 = arith.constant 0 : i32
    %c0_i32_0 = arith.constant 0 : i32
    %c0_i32_1 = arith.constant 0 : i32
    return %c0_i32, %c0_i32_0 : i32, i32
  }
  func.func @transform_6(%arg0: i32, %arg1: i32) -> (i32, i32) {
    %c0_i32 = arith.constant 0 : i32
    %c0_i32_0 = arith.constant 0 : i32
    %c0_i32_1 = arith.constant 0 : i32
    return %c0_i32, %c0_i32_0 : i32, i32
  }
  func.func @transform_7(%arg0: i32, %arg1: i32) -> (i32, i32, i32) {
    %c0_i32 = arith.constant 0 : i32
    %c0_i32_0 = arith.constant 0 : i32
    return %arg0, %arg1, %c0_i32 : i32, i32, i32
  }
}

</mosaic_0001>

<llo_original>
// kernel: tpu_custom_call.1
$region0: #{tpu_custom_call.1}
  #allocation0 [shape = 'u32[]', space=smem, size = 0x4, offset = 0x4, fixed_abs, tag = 'smem constant byte address 0x4 - core index']
  #allocation1 [shape = 'u32[144,128]{1,0:T(1,128)}', space=vmem, size = 0x12000, scoped, tag = 'internal scratch']
  %s0 = inlined_call_operand.vmem [shape: bf16[2,16,16,4], index: 0, kind: input, shape index: {}]
  %s1 = inlined_call_operand.vmem [shape: bf16[2,1,16,4], index: 1, kind: input, shape index: {}]
  %s2 = inlined_call_operand.vmem [shape: bf16[4,32], index: 2, kind: input, shape index: {}]
  %s3 = inlined_call_operand.vmem [shape: bf16[4,16], index: 3, kind: input, shape index: {}]
  %s4 = inlined_call_operand.vmem [shape: bf16[4,16], index: 4, kind: input, shape index: {}]
  %s5 = inlined_call_operand.vmem [shape: bf16[4,8], index: 5, kind: input, shape index: {}]
  %s6 = inlined_call_operand.vmem [shape: f32[1,32], index: 6, kind: input, shape index: {}]
  %s7 = inlined_call_operand.vmem [shape: bf16[2,256,32], index: 7, kind: output, shape index: {}]
  %s8 = sld [smem:[#allocation0]]
  $region61: #{tpu_custom_call.1} parent=0
    _
  %s10 = ssub.s32 1, %s8
  %s11 = scalar_select 0, %s10, %s8
  loop: start=0, step=1, limit=4
  $region2: #{tpu_custom_call.1} parent=0 // loop_pre_header
    _
  $region3: #{tpu_custom_call.1} parent=0 // loop_header
    %s13 = sphi 0, %s17
    %p14 = scmp.ge.s32.totalorder %s13, 4
    %s20 = sphi 0, %s32
    %s21 = sphi 0, %s28
    %s22 = sphi 0, %s20
    %s23 = sphi 0, %s21
    %s24 = sphi 0, %s22
    %s25 = sphi 0, %s23
    %s37 = sphi 0, %s39
    %s40 = sphi 0, %s37
    %s41 = sphi 0, %s40
    %s57 = sphi 0, %s41
    %s65 = sphi 0, %s67
    %s68 = sphi 0, %s65
    %s69 = sphi 0, %s68
    %s85 = sphi 0, %s69
    %s89 = sphi 0, %s89
    %s91 = sphi 0, %s89
    %s92 = sphi 0, %s91
    %s106 = sphi 0, %s92
    %s110 = sphi 0, %s110
    %s112 = sphi 0, %s110
    %s113 = sphi 0, %s112
    %s127 = sphi 0, %s113
    %s131 = sphi 0, %s131
    %s133 = sphi 0, %s131
    %s134 = sphi 0, %s133
    %s148 = sphi 0, %s134
    %s152 = sphi 0, %s152
    %s154 = sphi 0, %s152
    %s155 = sphi 0, %s154
    %s169 = sphi 0, %s155
    %s173 = sphi 0, %s173
    %s175 = sphi 0, %s173
    %s176 = sphi 0, %s175
    %s190 = sphi 0, %s176
    %s198 = sphi 0, %s200
    %s201 = sphi 0, %s198
    %s202 = sphi 0, %s201
    %s218 = sphi 0, %s202
  $region4: #{tpu_custom_call.1} parent=0 // loop_header_branch
    %16 = sbr.rel (%p14) target = $region8
  $region5: #{tpu_custom_call.1} parent=0 // loop_body
    %s18 = ssub.s32 %s13, 1
    %s19 = ssub.s32 %s13, 2
    %s26 = sadd.s32 1, %s21
    %p27 = scmp.ge.s32.totalorder %s26, 1
    %s28 = scalar_select %p27, 0, %s26
    %s29 = sadd.s32 1, %s20
    %s30 = scalar_select %p27, %s29, %s20
    %p31 = scmp.ge.s32.totalorder %s30, 2
    %s32 = scalar_select %p31, 0, %s30
    %s33 = ssub.s32 %s20, %s32
    %s34 = ssub.s32 %s21, %s28
    %s35 = sor.u32 %s33, %s34
    %p36 = scmp.eq.s32.totalorder %s35, 0
    %s38 = sadd.s32 %s37, 1
    %s39 = scalar_select %p36, %s37, %s38
    %p42 = pneg %p36
    %p43 = scmp.eq.s32.totalorder %s13, 1
    %p44 = por %p42, %p43
    %p45 = scmp.ne.s32.totalorder %s37, %s40
    %p46 = scmp.eq.s32.totalorder %s13, 0
    %p47 = por %p45, %p46
    %p48 = scmp.ne.s32.totalorder %s37, %s40
    %p49 = scmp.eq.s32.totalorder %s18, 1
    %p50 = por %p48, %p49
    %p51 = scmp.ne.s32.totalorder %s40, %s41
    %p52 = scmp.eq.s32.totalorder %s18, 0
    %p53 = por %p51, %p52
    %p54 = scmp.ne.s32.totalorder %s40, %s41
    %p55 = scmp.eq.s32.totalorder %s19, 1
    %p56 = por %p54, %p55
    %p58 = scmp.ne.s32.totalorder %s41, %s57
    %p59 = scmp.eq.s32.totalorder %s19, 0
    %p60 = por %p58, %p59
    %s61 = ssub.s32 %s20, %s32
    %s62 = ssub.s32 %s21, %s28
    %s63 = sor.u32 %s61, %s62
    %p64 = scmp.eq.s32.totalorder %s63, 0
    %s66 = sadd.s32 %s65, 1
    %s67 = scalar_select %p64, %s65, %s66
    %p70 = pneg %p64
    %p71 = scmp.eq.s32.totalorder %s13, 1
    %p72 = por %p70, %p71
    %p73 = scmp.ne.s32.totalorder %s65, %s68
    %p74 = scmp.eq.s32.totalorder %s13, 0
    %p75 = por %p73, %p74
    %p76 = scmp.ne.s32.totalorder %s65, %s68
    %p77 = scmp.eq.s32.totalorder %s18, 1
    %p78 = por %p76, %p77
    %p79 = scmp.ne.s32.totalorder %s68, %s69
    %p80 = scmp.eq.s32.totalorder %s18, 0
    %p81 = por %p79, %p80
    %p82 = scmp.ne.s32.totalorder %s68, %s69
    %p83 = scmp.eq.s32.totalorder %s19, 1
    %p84 = por %p82, %p83
    %p86 = scmp.ne.s32.totalorder %s69, %s85
    %p87 = scmp.eq.s32.totalorder %s19, 0
    %p88 = por %p86, %p87
    %s90 = sadd.s32 %s89, 1
    %p93 = scmp.eq.s32.totalorder %s13, 1
    %p94 = scmp.ne.s32.totalorder %s89, %s91
    %p95 = scmp.eq.s32.totalorder %s13, 0
    %p96 = por %p94, %p95
    %p97 = scmp.ne.s32.totalorder %s89, %s91
    %p98 = scmp.eq.s32.totalorder %s18, 1
    %p99 = por %p97, %p98
    %p100 = scmp.ne.s32.totalorder %s91, %s92
    %p101 = scmp.eq.s32.totalorder %s18, 0
    %p102 = por %p100, %p101
    %p103 = scmp.ne.s32.totalorder %s91, %s92
    %p104 = scmp.eq.s32.totalorder %s19, 1
    %p105 = por %p103, %p104
    %p107 = scmp.ne.s32.totalorder %s92, %s106
    %p108 = scmp.eq.s32.totalorder %s19, 0
    %p109 = por %p107, %p108
    %s111 = sadd.s32 %s110, 1
    %p114 = scmp.eq.s32.totalorder %s13, 1
    %p115 = scmp.ne.s32.totalorder %s110, %s112
    %p116 = scmp.eq.s32.totalorder %s13, 0
    %p117 = por %p115, %p116
    %p118 = scmp.ne.s32.totalorder %s110, %s112
    %p119 = scmp.eq.s32.totalorder %s18, 1
    %p120 = por %p118, %p119
    %p121 = scmp.ne.s32.totalorder %s112, %s113
    %p122 = scmp.eq.s32.totalorder %s18, 0
    %p123 = por %p121, %p122
    %p124 = scmp.ne.s32.totalorder %s112, %s113
    %p125 = scmp.eq.s32.totalorder %s19, 1
    %p126 = por %p124, %p125
    %p128 = scmp.ne.s32.totalorder %s113, %s127
    %p129 = scmp.eq.s32.totalorder %s19, 0
    %p130 = por %p128, %p129
    %s132 = sadd.s32 %s131, 1
    %p135 = scmp.eq.s32.totalorder %s13, 1
    %p136 = scmp.ne.s32.totalorder %s131, %s133
    %p137 = scmp.eq.s32.totalorder %s13, 0
    %p138 = por %p136, %p137
    %p139 = scmp.ne.s32.totalorder %s131, %s133
    %p140 = scmp.eq.s32.totalorder %s18, 1
    %p141 = por %p139, %p140
    %p142 = scmp.ne.s32.totalorder %s133, %s134
    %p143 = scmp.eq.s32.totalorder %s18, 0
    %p144 = por %p142, %p143
    %p145 = scmp.ne.s32.totalorder %s133, %s134
    %p146 = scmp.eq.s32.totalorder %s19, 1
    %p147 = por %p145, %p146
    %p149 = scmp.ne.s32.totalorder %s134, %s148
    %p150 = scmp.eq.s32.totalorder %s19, 0
    %p151 = por %p149, %p150
    %s153 = sadd.s32 %s152, 1
    %p156 = scmp.eq.s32.totalorder %s13, 1
    %p157 = scmp.ne.s32.totalorder %s152, %s154
    %p158 = scmp.eq.s32.totalorder %s13, 0
    %p159 = por %p157, %p158
    %p160 = scmp.ne.s32.totalorder %s152, %s154
    %p161 = scmp.eq.s32.totalorder %s18, 1
    %p162 = por %p160, %p161
    %p163 = scmp.ne.s32.totalorder %s154, %s155
    %p164 = scmp.eq.s32.totalorder %s18, 0
    %p165 = por %p163, %p164
    %p166 = scmp.ne.s32.totalorder %s154, %s155
    %p167 = scmp.eq.s32.totalorder %s19, 1
    %p168 = por %p166, %p167
    %p170 = scmp.ne.s32.totalorder %s155, %s169
    %p171 = scmp.eq.s32.totalorder %s19, 0
    %p172 = por %p170, %p171
    %s174 = sadd.s32 %s173, 1
    %p177 = scmp.eq.s32.totalorder %s13, 1
    %p178 = scmp.ne.s32.totalorder %s173, %s175
    %p179 = scmp.eq.s32.totalorder %s13, 0
    %p180 = por %p178, %p179
    %p181 = scmp.ne.s32.totalorder %s173, %s175
    %p182 = scmp.eq.s32.totalorder %s18, 1
    %p183 = por %p181, %p182
    %p184 = scmp.ne.s32.totalorder %s175, %s176
    %p185 = scmp.eq.s32.totalorder %s18, 0
    %p186 = por %p184, %p185
    %p187 = scmp.ne.s32.totalorder %s175, %s176
    %p188 = scmp.eq.s32.totalorder %s19, 1
    %p189 = por %p187, %p188
    %p191 = scmp.ne.s32.totalorder %s176, %s190
    %p192 = scmp.eq.s32.totalorder %s19, 0
    %p193 = por %p191, %p192
    %s194 = ssub.s32 %s20, %s32
    %s195 = ssub.s32 %s21, %s28
    %s196 = sor.u32 %s194, %s195
    %p197 = scmp.eq.s32.totalorder %s196, 0
    %s199 = sadd.s32 %s198, 1
    %s200 = scalar_select %p197, %s198, %s199
    %p203 = pneg %p197
    %p204 = scmp.eq.s32.totalorder %s13, 1
    %p205 = por %p203, %p204
    %p206 = scmp.ne.s32.totalorder %s198, %s201
    %p207 = scmp.eq.s32.totalorder %s13, 0
    %p208 = por %p206, %p207
    %p209 = scmp.ne.s32.totalorder %s198, %s201
    %p210 = scmp.eq.s32.totalorder %s18, 1
    %p211 = por %p209, %p210
    %p212 = scmp.ne.s32.totalorder %s201, %s202
    %p213 = scmp.eq.s32.totalorder %s18, 0
    %p214 = por %p212, %p213
    %p215 = scmp.ne.s32.totalorder %s201, %s202
    %p216 = scmp.eq.s32.totalorder %s19, 1
    %p217 = por %p215, %p216
    %p219 = scmp.ne.s32.totalorder %s202, %s218
    %p220 = scmp.eq.s32.totalorder %s19, 0
    %p221 = por %p219, %p220
    %p222 = scmp.le.s32.totalorder 1, %s13
    %p223 = scmp.lt.s32.totalorder %s13, 3
    %p224 = pnand %p222, %p223
    %p225 = pneg %p224
    // Predicated region
    $region9: #{tpu_custom_call.1} parent=5 // pred_check
      _
    $region10: #{tpu_custom_call.1} parent=5 // pred_check_branch
      %227 = sbr.rel (%p224) target = $region12
    $region11: #{tpu_custom_call.1} parent=5 // pred_region
      %s228 = ssub.s32 %s13, 1
      // Predicated region
      $region13: #{tpu_custom_call.1} parent=11 // pred_check
        %p229 = pneg %p102
      $region14: #{tpu_custom_call.1} parent=11 // pred_check_branch
        %231 = sbr.rel (%p229) target = $region16
      $region15: #{tpu_custom_call.1} parent=11 // pred_region
        _
      $region16: #{tpu_custom_call.1} parent=11 // pred_fallthru
        _
      // Predicated region
      $region17: #{tpu_custom_call.1} parent=11 // pred_check
        %p232 = pneg %p123
      $region18: #{tpu_custom_call.1} parent=11 // pred_check_branch
        %234 = sbr.rel (%p232) target = $region20
      $region19: #{tpu_custom_call.1} parent=11 // pred_region
        _
      $region20: #{tpu_custom_call.1} parent=11 // pred_fallthru
        _
      // Predicated region
      $region21: #{tpu_custom_call.1} parent=11 // pred_check
        %p235 = pneg %p144
      $region22: #{tpu_custom_call.1} parent=11 // pred_check_branch
        %237 = sbr.rel (%p235) target = $region24
      $region23: #{tpu_custom_call.1} parent=11 // pred_region
        _
      $region24: #{tpu_custom_call.1} parent=11 // pred_fallthru
        _
      // Predicated region
      $region25: #{tpu_custom_call.1} parent=11 // pred_check
        %p238 = pneg %p165
      $region26: #{tpu_custom_call.1} parent=11 // pred_check_branch
        %240 = sbr.rel (%p238) target = $region28
      $region27: #{tpu_custom_call.1} parent=11 // pred_region
        _
      $region28: #{tpu_custom_call.1} parent=11 // pred_fallthru
        _
      // Predicated region
      $region29: #{tpu_custom_call.1} parent=11 // pred_check
        %p241 = pneg %p186
      $region30: #{tpu_custom_call.1} parent=11 // pred_check_branch
        %243 = sbr.rel (%p241) target = $region32
      $region31: #{tpu_custom_call.1} parent=11 // pred_region
        _
      $region32: #{tpu_custom_call.1} parent=11 // pred_fallthru
        _
    $region12: #{tpu_custom_call.1} parent=5 // pred_fallthru
      _
    %p244 = scmp.lt.s32.totalorder %s13, 2
    // Predicated region
    $region33: #{tpu_custom_call.1} parent=5 // pred_check
      %p245 = pneg %p244
    $region34: #{tpu_custom_call.1} parent=5 // pred_check_branch
      %247 = sbr.rel (%p245) target = $region36
    $region35: #{tpu_custom_call.1} parent=5 // pred_region
      // Predicated region
      $region37: #{tpu_custom_call.1} parent=35 // pred_check
        %p248 = pneg %p47
      $region38: #{tpu_custom_call.1} parent=35 // pred_check_branch
        %250 = sbr.rel (%p248) target = $region40
      $region39: #{tpu_custom_call.1} parent=35 // pred_region
        %s251 = smul.u32 16, %s21
        %p252 = scmp.lt.s32.totalorder %s20, 1
        %s253 = scalar_select %p252, %s20, 1
        %p254 = scmp.lt.s32.totalorder %s251, 15
        %s255 = scalar_select %p254, %s251, 15
        %s256 = smul.addr %s255, 2
        %s257 = smul.addr %s253, 32
        %s258 = sadd.s32 %s256, %s257
        %s259 = smul.addr %s258, 4
        %s260 = scalar_lea.vmem %s0, %s259
        %s261 = smul.u32 16, %s21
      $region40: #{tpu_custom_call.1} parent=35 // pred_fallthru
        _
      // Predicated region
      $region41: #{tpu_custom_call.1} parent=35 // pred_check
        %p262 = pneg %p75
      $region42: #{tpu_custom_call.1} parent=35 // pred_check_branch
        %264 = sbr.rel (%p262) target = $region44
      $region43: #{tpu_custom_call.1} parent=35 // pred_region
        %p265 = scmp.lt.s32.totalorder %s20, 1
        %s266 = scalar_select %p265, %s20, 1
        %p267 = scmp.lt.s32.totalorder %s21, 0
        %s268 = scalar_select %p267, %s21, 0
        %s269 = smul.addr %s268, 2
        %s270 = smul.addr %s266, 2
        %s271 = sadd.s32 %s269, %s270
        %s272 = smul.addr %s271, 4
        %s273 = scalar_lea.vmem %s1, %s272
      $region44: #{tpu_custom_call.1} parent=35 // pred_fallthru
        _
    $region36: #{tpu_custom_call.1} parent=5 // pred_fallthru
      _
    %p274 = scmp.le.s32.totalorder 1, %s13
    %p275 = scmp.lt.s32.totalorder %s13, 3
    %p276 = pnand %p274, %p275
    %p277 = pneg %p276
    // Predicated region
    $region45: #{tpu_custom_call.1} parent=5 // pred_check
      _
    $region46: #{tpu_custom_call.1} parent=5 // pred_check_branch
      %279 = sbr.rel (%p276) target = $region48
    $region47: #{tpu_custom_call.1} parent=5 // pred_region
      %s280 = ssub.s32 %s13, 1
      %s281 = smul.u32 16, %s23
      %p282 = scmp.lt.s32.totalorder %s22, 1
      %s283 = scalar_select %p282, %s22, 1
      %p284 = scmp.lt.s32.totalorder %s281, 15
      %s285 = scalar_select %p284, %s281, 15
      %s286 = smul.addr %s285, 2
      %s287 = smul.addr %s283, 32
      %s288 = sadd.s32 %s286, %s287
      %s289 = smul.addr %s288, 4
      %s290 = scalar_lea.vmem %s0, %s289
      %p291 = pneg %p53
      %p292 = pneg %p50
      %p293 = scmp.lt.s32.totalorder %s22, 1
      %s294 = scalar_select %p293, %s22, 1
      %p295 = scmp.lt.s32.totalorder %s23, 0
      %s296 = scalar_select %p295, %s23, 0
      %s297 = smul.addr %s296, 2
      %s298 = smul.addr %s294, 2
      %s299 = sadd.s32 %s297, %s298
      %s300 = smul.addr %s299, 4
      %s301 = scalar_lea.vmem %s1, %s300
      %p302 = pneg %p81
      %p303 = pneg %p78
      %p304 = pneg %p102
      %p305 = pneg %p99
      %p306 = pneg %p123
      %p307 = pneg %p120
      %p308 = pneg %p144
      %p309 = pneg %p141
      %p310 = pneg %p165
      %p311 = pneg %p162
      %p312 = pneg %p186
      %p313 = pneg %p183
      %p314 = pneg %p214
      %p315 = pneg %p211
      %s316 = smul.u32 32, %s23
      %p317 = scmp.lt.s32.totalorder %s22, 1
      %s318 = scalar_select %p317, %s22, 1
      %p319 = scmp.lt.s32.totalorder %s316, 31
      %s320 = scalar_select %p319, %s316, 31
      %s321 = smul.addr %s318, 32
      %s322 = sadd.s32 %s320, %s321
      %s323 = smul.addr %s322, 4
      %s324 = scalar_lea.vmem %s7, %s323
      %s325 = smul.u32 16, %s23
      %p326 = scmp.lt.s32.totalorder %s22, 1
      %s327 = scalar_select %p326, %s22, 1
      %p328 = scmp.lt.s32.totalorder %s325, 15
      %s329 = scalar_select %p328, %s325, 15
      %s330 = smul.addr %s329, 2
      %s331 = smul.addr %s327, 32
      %s332 = sadd.s32 %s330, %s331
      %s333 = smul.addr %s332, 4
      %s334 = scalar_lea.vmem %s0, %s333
      %s335 = smul.u32 16, %s23
      %p336 = scmp.lt.s32.totalorder %s22, 1
      %s337 = scalar_select %p336, %s22, 1
      %p338 = scmp.lt.s32.totalorder %s23, 0
      %s339 = scalar_select %p338, %s23, 0
      %s340 = smul.addr %s339, 2
      %s341 = smul.addr %s337, 2
      %s342 = sadd.s32 %s340, %s341
      %s343 = smul.addr %s342, 4
      %s344 = scalar_lea.vmem %s1, %s343
      %s345 = smul.u32 32, %s23
      %p346 = scmp.lt.s32.totalorder %s22, 1
      %s347 = scalar_select %p346, %s22, 1
      %p348 = scmp.lt.s32.totalorder %s345, 31
      %s349 = scalar_select %p348, %s345, 31
      %s350 = smul.addr %s347, 32
      %s351 = sadd.s32 %s349, %s350
      %s352 = smul.addr %s351, 4
      %s353 = scalar_lea.vmem %s7, %s352
      %s354 = smul.u32 32, %s23
      %v356 = vld [vmem:[%s334] sm:$0xf]
      %v357 = vld [vmem:[%s334 + $0x4] sm:$0xf]
      %v358 = vld [vmem:[%s334 + $0x8] sm:$0xf]
      %v359 = vld [vmem:[%s334 + $0xc] sm:$0xf]
      %v360 = vld [vmem:[%s334 + $0x10] sm:$0xf]
      %v361 = vld [vmem:[%s334 + $0x14] sm:$0xf]
      %v362 = vld [vmem:[%s334 + $0x18] sm:$0xf]
      %v363 = vld [vmem:[%s334 + $0x1c] sm:$0xf]
      %v364 = vld [vmem:[%s334 + $0x20] sm:$0xf]
      %v365 = vld [vmem:[%s334 + $0x24] sm:$0xf]
      %v366 = vld [vmem:[%s334 + $0x28] sm:$0xf]
      %v367 = vld [vmem:[%s334 + $0x2c] sm:$0xf]
      %v368 = vld [vmem:[%s334 + $0x30] sm:$0xf]
      %v369 = vld [vmem:[%s334 + $0x34] sm:$0xf]
      %v370 = vld [vmem:[%s334 + $0x38] sm:$0xf]
      %v371 = vld [vmem:[%s334 + $0x3c] sm:$0xf]
      %v372 = vld [vmem:[%s334 + $0x40] sm:$0xf]
      %v373 = vld [vmem:[%s334 + $0x44] sm:$0xf]
      %v374 = vld [vmem:[%s334 + $0x48] sm:$0xf]
      %v375 = vld [vmem:[%s334 + $0x4c] sm:$0xf]
      %v376 = vld [vmem:[%s334 + $0x50] sm:$0xf]
      %v377 = vld [vmem:[%s334 + $0x54] sm:$0xf]
      %v378 = vld [vmem:[%s334 + $0x58] sm:$0xf]
      %v379 = vld [vmem:[%s334 + $0x5c] sm:$0xf]
      %v380 = vld [vmem:[%s334 + $0x60] sm:$0xf]
      %v381 = vld [vmem:[%s334 + $0x64] sm:$0xf]
      %v382 = vld [vmem:[%s334 + $0x68] sm:$0xf]
      %v383 = vld [vmem:[%s334 + $0x6c] sm:$0xf]
      %v384 = vld [vmem:[%s334 + $0x70] sm:$0xf]
      %v385 = vld [vmem:[%s334 + $0x74] sm:$0xf]
      %v386 = vld [vmem:[%s334 + $0x78] sm:$0xf]
      %v387 = vld [vmem:[%s334 + $0x7c] sm:$0xf]
      %v388 = vld [vmem:[%s344] sm:$0xf]
      %v389 = vld [vmem:[%s344 + $0x4] sm:$0xf]
      %v422 = vunpack.c.l.b16 %v356
      %v423 = vunpack.c.l.b16 %v357
      %v424 = vunpack.c.l.b16 %v358
      %v425 = vunpack.c.l.b16 %v359
      %v426 = vunpack.c.l.b16 %v360
      %v427 = vunpack.c.l.b16 %v361
      %v428 = vunpack.c.l.b16 %v362
      %v429 = vunpack.c.l.b16 %v363
      %v430 = vunpack.c.l.b16 %v364
      %v431 = vunpack.c.l.b16 %v365
      %v432 = vunpack.c.l.b16 %v366
      %v433 = vunpack.c.l.b16 %v367
      %v434 = vunpack.c.l.b16 %v368
      %v435 = vunpack.c.l.b16 %v369
      %v436 = vunpack.c.l.b16 %v370
      %v437 = vunpack.c.l.b16 %v371
      %v438 = vunpack.c.l.b16 %v372
      %v439 = vunpack.c.l.b16 %v373
      %v440 = vunpack.c.l.b16 %v374
      %v441 = vunpack.c.l.b16 %v375
      %v442 = vunpack.c.l.b16 %v376
      %v443 = vunpack.c.l.b16 %v377
      %v444 = vunpack.c.l.b16 %v378
      %v445 = vunpack.c.l.b16 %v379
      %v446 = vunpack.c.l.b16 %v380
      %v447 = vunpack.c.l.b16 %v381
      %v448 = vunpack.c.l.b16 %v382
      %v449 = vunpack.c.l.b16 %v383
      %v450 = vunpack.c.l.b16 %v384
      %v451 = vunpack.c.l.b16 %v385
      %v452 = vunpack.c.l.b16 %v386
      %v453 = vunpack.c.l.b16 %v387
      %v454 = vpack.c.b16 %v423, %v422
      %v455 = vpack.c.b16 %v425, %v424
      %v456 = vpack.c.b16 %v427, %v426
      %v457 = vpack.c.b16 %v429, %v428
      %v458 = vpack.c.b16 %v431, %v430
      %v459 = vpack.c.b16 %v433, %v432
      %v460 = vpack.c.b16 %v435, %v434
      %v461 = vpack.c.b16 %v437, %v436
      %v462 = vpack.c.b16 %v439, %v438
      %v463 = vpack.c.b16 %v441, %v440
      %v464 = vpack.c.b16 %v443, %v442
      %v465 = vpack.c.b16 %v445, %v444
      %v466 = vpack.c.b16 %v447, %v446
      %v467 = vpack.c.b16 %v449, %v448
      %v468 = vpack.c.b16 %v451, %v450
      %v469 = vpack.c.b16 %v453, %v452
      %v471 = vshrl.u32 %v454, 16
      %v473 = vshll.u32 %v454, 16
      %v475 = vrot.slane %v473, 1
      %v476 = vor.u32 %v471, %v475
      %v478 = vshrl.u32 %v455, 16
      %v480 = vshll.u32 %v455, 16
      %v482 = vrot.slane %v480, 1
      %v483 = vor.u32 %v478, %v482
      %v485 = vshrl.u32 %v456, 16
      %v487 = vshll.u32 %v456, 16
      %v489 = vrot.slane %v487, 1
      %v490 = vor.u32 %v485, %v489
      %v492 = vshrl.u32 %v457, 16
      %v494 = vshll.u32 %v457, 16
      %v496 = vrot.slane %v494, 1
      %v497 = vor.u32 %v492, %v496
      %v499 = vshrl.u32 %v458, 16
      %v501 = vshll.u32 %v458, 16
      %v503 = vrot.slane %v501, 1
      %v504 = vor.u32 %v499, %v503
      %v506 = vshrl.u32 %v459, 16
      %v508 = vshll.u32 %v459, 16
      %v510 = vrot.slane %v508, 1
      %v511 = vor.u32 %v506, %v510
      %v513 = vshrl.u32 %v460, 16
      %v515 = vshll.u32 %v460, 16
      %v517 = vrot.slane %v515, 1
      %v518 = vor.u32 %v513, %v517
      %v520 = vshrl.u32 %v461, 16
      %v522 = vshll.u32 %v461, 16
      %v524 = vrot.slane %v522, 1
      %v525 = vor.u32 %v520, %v524
      %v527 = vshrl.u32 %v462, 16
      %v529 = vshll.u32 %v462, 16
      %v531 = vrot.slane %v529, 1
      %v532 = vor.u32 %v527, %v531
      %v534 = vshrl.u32 %v463, 16
      %v536 = vshll.u32 %v463, 16
      %v538 = vrot.slane %v536, 1
      %v539 = vor.u32 %v534, %v538
      %v541 = vshrl.u32 %v464, 16
      %v543 = vshll.u32 %v464, 16
      %v545 = vrot.slane %v543, 1
      %v546 = vor.u32 %v541, %v545
      %v548 = vshrl.u32 %v465, 16
      %v550 = vshll.u32 %v465, 16
      %v552 = vrot.slane %v550, 1
      %v553 = vor.u32 %v548, %v552
      %v555 = vshrl.u32 %v466, 16
      %v557 = vshll.u32 %v466, 16
      %v559 = vrot.slane %v557, 1
      %v560 = vor.u32 %v555, %v559
      %v562 = vshrl.u32 %v467, 16
      %v564 = vshll.u32 %v467, 16
      %v566 = vrot.slane %v564, 1
      %v567 = vor.u32 %v562, %v566
      %v569 = vshrl.u32 %v468, 16
      %v571 = vshll.u32 %v468, 16
      %v573 = vrot.slane %v571, 1
      %v574 = vor.u32 %v569, %v573
      %v576 = vshrl.u32 %v469, 16
      %v578 = vshll.u32 %v469, 16
      %v580 = vrot.slane %v578, 1
      %v581 = vor.u32 %v576, %v580
      %vm598 = vcmask 1047552
      %vm599 = vsmask.f32 7424
      %vm600 = vmand %vm598, %vm599
      %v601 = vsel %vm600, %v476, 0
      %v602 = vsel %vm600, %v483, 0
      %v603 = vsel %vm600, %v490, 0
      %v604 = vsel %vm600, %v497, 0
      %v605 = vsel %vm600, %v504, 0
      %v606 = vsel %vm600, %v511, 0
      %v607 = vsel %vm600, %v518, 0
      %v608 = vsel %vm600, %v525, 0
      %v609 = vsel %vm600, %v532, 0
      %v610 = vsel %vm600, %v539, 0
      %v611 = vsel %vm600, %v546, 0
      %v612 = vsel %vm600, %v553, 0
      %v613 = vsel %vm600, %v560, 0
      %v614 = vsel %vm600, %v567, 0
      %v615 = vsel %vm600, %v574, 0
      %v616 = vsel %vm600, %v581, 0
      %v619 = vunpack.c.l.b16 %v388
      %v620 = vunpack.c.l.b16 %v389
      %v621 = vpack.c.b16 %v620, %v619
      %v623 = vshrl.u32 %v621, 16
      %v625 = vshll.u32 %v621, 16
      %v627 = vrot.slane %v625, 1
      %v628 = vor.u32 %v623, %v627
      %v630 = vsel %vm600, %v628, 0
      %v631 = vld [vmem:[%s2] sm:$0x3]
      %vm632 = vcmask 31744
      %v633 = vsel %vm632, %v454, 0
      %v635 = vsel %vm632, %v455, 0
      %v637 = vsel %vm632, %v456, 0
      %v639 = vsel %vm632, %v457, 0
      %v641 = vsel %vm632, %v458, 0
      %v643 = vsel %vm632, %v459, 0
      %v645 = vsel %vm632, %v460, 0
      %v647 = vsel %vm632, %v461, 0
      %v649 = vsel %vm632, %v462, 0
      %v651 = vsel %vm632, %v463, 0
      %v653 = vsel %vm632, %v464, 0
      %v655 = vsel %vm632, %v465, 0
      %v657 = vsel %vm632, %v466, 0
      %v659 = vsel %vm632, %v467, 0
      %v661 = vsel %vm632, %v468, 0
      %v663 = vsel %vm632, %v469, 0
      %vm665 = vcmask 1041408
      %v667 = vsel %vm665, %v631, 0
      %669 = vmatprep.subr.bf16.mxu0 0
      %670 = vmatpush1.bf16.msra.mxu0 %v667
      %671 = vmatprep.subr.bf16.mxu0 0
      %672 = vmatpush1.bf16.msra.mxu0 0
      %673 = vmatprep.subr.bf16.mxu0 0
      %674 = vmatpush1.bf16.msra.mxu0 0
      %675 = vmatprep.subr.bf16.mxu0 0
      %676 = vmatpush1.bf16.msra.mxu0 0
      %677 = vmatprep.subr.bf16.mxu0 0
      %678 = vmatpush1.bf16.msra.mxu0 0
      %679 = vmatprep.subr.bf16.mxu0 0
      %680 = vmatpush1.bf16.msra.mxu0 0
      %681 = vmatprep.subr.bf16.mxu0 0
      %682 = vmatpush1.bf16.msra.mxu0 0
      %683 = vmatprep.subr.bf16.mxu0 0
      %684 = vmatpush1.bf16.msra.mxu0 0
      %685 = vmatprep.subr.bf16.mxu0 0
      %686 = vmatpush1.bf16.msra.mxu0 0
      %687 = vmatprep.subr.bf16.mxu0 0
      %688 = vmatpush1.bf16.msra.mxu0 0
      %689 = vmatprep.subr.bf16.mxu0 0
      %690 = vmatpush1.bf16.msra.mxu0 0
      %691 = vmatprep.subr.bf16.mxu0 0
      %692 = vmatpush1.bf16.msra.mxu0 0
      %693 = vmatprep.subr.bf16.mxu0 0
      %694 = vmatpush1.bf16.msra.mxu0 0
      %695 = vmatprep.subr.bf16.mxu0 0
      %696 = vmatpush1.bf16.msra.mxu0 0
      %697 = vmatprep.subr.bf16.mxu0 0
      %698 = vmatpush1.bf16.msra.mxu0 0
      %699 = vmatprep.subr.bf16.mxu0 0
      %700 = vmatpush1.bf16.msra.mxu0 0
      %701 = vmatprep.mubr.bf16.mxu0 0
      %702 = vmatmul.mubr.bf16.gmra.mrb[0].mxu0 %v633
      %v703 = vpop.f32.mrb[0].mxu0
      %v704 = vadd.f32 0.0, %v703
      %v705 = vpop.f32.mrb[0].mxu0
      %v706 = vpop.f32.mrb[0].mxu0
      %v707 = vadd.f32 0.0, %v706
      %v708 = vpop.f32.mrb[0].mxu0
      %709 = vmatprep.mubr.bf16.mxu0 0
      %710 = vmatmul.mubr.bf16.gmra.mrb[0].mxu0 %v635
      %v711 = vpop.f32.mrb[0].mxu0
      %v712 = vadd.f32 0.0, %v711
      %v713 = vpop.f32.mrb[0].mxu0
      %v714 = vpop.f32.mrb[0].mxu0
      %v715 = vadd.f32 0.0, %v714
      %v716 = vpop.f32.mrb[0].mxu0
      %717 = vmatprep.mubr.bf16.mxu0 0
      %718 = vmatmul.mubr.bf16.gmra.mrb[0].mxu0 %v637
      %v719 = vpop.f32.mrb[0].mxu0
      %v720 = vadd.f32 0.0, %v719
      %v721 = vpop.f32.mrb[0].mxu0
      %v722 = vpop.f32.mrb[0].mxu0
      %v723 = vadd.f32 0.0, %v722
      %v724 = vpop.f32.mrb[0].mxu0
      %725 = vmatprep.mubr.bf16.mxu0 0
      %726 = vmatmul.mubr.bf16.gmra.mrb[0].mxu0 %v639
      %v727 = vpop.f32.mrb[0].mxu0
      %v728 = vadd.f32 0.0, %v727
      %v729 = vpop.f32.mrb[0].mxu0
      %v730 = vpop.f32.mrb[0].mxu0
      %v731 = vadd.f32 0.0, %v730
      %v732 = vpop.f32.mrb[0].mxu0
      %733 = vmatprep.mubr.bf16.mxu0 0
      %734 = vmatmul.mubr.bf16.gmra.mrb[0].mxu0 %v641
      %v735 = vpop.f32.mrb[0].mxu0
      %v736 = vadd.f32 0.0, %v735
      %v737 = vpop.f32.mrb[0].mxu0
      %v738 = vpop.f32.mrb[0].mxu0
      %v739 = vadd.f32 0.0, %v738
      %v740 = vpop.f32.mrb[0].mxu0
      %741 = vmatprep.mubr.bf16.mxu0 0
      %742 = vmatmul.mubr.bf16.gmra.mrb[0].mxu0 %v643
      %v743 = vpop.f32.mrb[0].mxu0
      %v744 = vadd.f32 0.0, %v743
      %v745 = vpop.f32.mrb[0].mxu0
      %v746 = vpop.f32.mrb[0].mxu0
      %v747 = vadd.f32 0.0, %v746
      %v748 = vpop.f32.mrb[0].mxu0
      %749 = vmatprep.mubr.bf16.mxu0 0
      %750 = vmatmul.mubr.bf16.gmra.mrb[0].mxu0 %v645
      %v751 = vpop.f32.mrb[0].mxu0
      %v752 = vadd.f32 0.0, %v751
      %v753 = vpop.f32.mrb[0].mxu0
      %v754 = vpop.f32.mrb[0].mxu0
      %v755 = vadd.f32 0.0, %v754
      %v756 = vpop.f32.mrb[0].mxu0
      %757 = vmatprep.mubr.bf16.mxu0 0
      %758 = vmatmul.mubr.bf16.gmra.mrb[0].mxu0 %v647
      %v759 = vpop.f32.mrb[0].mxu0
      %v760 = vadd.f32 0.0, %v759
      %v761 = vpop.f32.mrb[0].mxu0
      %v762 = vpop.f32.mrb[0].mxu0
      %v763 = vadd.f32 0.0, %v762
      %v764 = vpop.f32.mrb[0].mxu0
      %765 = vmatprep.mubr.bf16.mxu0 0
      %766 = vmatmul.mubr.bf16.gmra.mrb[0].mxu0 %v649
      %v767 = vpop.f32.mrb[0].mxu0
      %v768 = vadd.f32 0.0, %v767
      %v769 = vpop.f32.mrb[0].mxu0
      %v770 = vpop.f32.mrb[0].mxu0
      %v771 = vadd.f32 0.0, %v770
      %v772 = vpop.f32.mrb[0].mxu0
      %773 = vmatprep.mubr.bf16.mxu0 0
      %774 = vmatmul.mubr.bf16.gmra.mrb[0].mxu0 %v651
      %v775 = vpop.f32.mrb[0].mxu0
      %v776 = vadd.f32 0.0, %v775
      %v777 = vpop.f32.mrb[0].mxu0
      %v778 = vpop.f32.mrb[0].mxu0
      %v779 = vadd.f32 0.0, %v778
      %v780 = vpop.f32.mrb[0].mxu0
      %781 = vmatprep.mubr.bf16.mxu0 0
      %782 = vmatmul.mubr.bf16.gmra.mrb[0].mxu0 %v653
      %v783 = vpop.f32.mrb[0].mxu0
      %v784 = vadd.f32 0.0, %v783
      %v785 = vpop.f32.mrb[0].mxu0
      %v786 = vpop.f32.mrb[0].mxu0
      %v787 = vadd.f32 0.0, %v786
      %v788 = vpop.f32.mrb[0].mxu0
      %789 = vmatprep.mubr.bf16.mxu0 0
      %790 = vmatmul.mubr.bf16.gmra.mrb[0].mxu0 %v655
      %v791 = vpop.f32.mrb[0].mxu0
      %v792 = vadd.f32 0.0, %v791
      %v793 = vpop.f32.mrb[0].mxu0
      %v794 = vpop.f32.mrb[0].mxu0
      %v795 = vadd.f32 0.0, %v794
      %v796 = vpop.f32.mrb[0].mxu0
      %797 = vmatprep.mubr.bf16.mxu0 0
      %798 = vmatmul.mubr.bf16.gmra.mrb[0].mxu0 %v657
      %v799 = vpop.f32.mrb[0].mxu0
      %v800 = vadd.f32 0.0, %v799
      %v801 = vpop.f32.mrb[0].mxu0
      %v802 = vpop.f32.mrb[0].mxu0
      %v803 = vadd.f32 0.0, %v802
      %v804 = vpop.f32.mrb[0].mxu0
      %805 = vmatprep.mubr.bf16.mxu0 0
      %806 = vmatmul.mubr.bf16.gmra.mrb[0].mxu0 %v659
      %v807 = vpop.f32.mrb[0].mxu0
      %v808 = vadd.f32 0.0, %v807
      %v809 = vpop.f32.mrb[0].mxu0
      %v810 = vpop.f32.mrb[0].mxu0
      %v811 = vadd.f32 0.0, %v810
      %v812 = vpop.f32.mrb[0].mxu0
      %813 = vmatprep.mubr.bf16.mxu0 0
      %814 = vmatmul.mubr.bf16.gmra.mrb[0].mxu0 %v661
      %v815 = vpop.f32.mrb[0].mxu0
      %v816 = vadd.f32 0.0, %v815
      %v817 = vpop.f32.mrb[0].mxu0
      %v818 = vpop.f32.mrb[0].mxu0
      %v819 = vadd.f32 0.0, %v818
      %v820 = vpop.f32.mrb[0].mxu0
      %821 = vmatprep.mubr.bf16.mxu0 0
      %822 = vmatmul.mubr.bf16.gmra.mrb[0].mxu0 %v663
      %v823 = vpop.f32.mrb[0].mxu0
      %v824 = vadd.f32 0.0, %v823
      %v825 = vpop.f32.mrb[0].mxu0
      %v826 = vpop.f32.mrb[0].mxu0
      %v827 = vadd.f32 0.0, %v826
      %v828 = vpop.f32.mrb[0].mxu0
      %829 = vdwg.mxu0
      %v830 = vld [vmem:[%s3] sm:$0x3]
      %v832 = vsel %vm632, %v601, 0
      %v835 = vsel %vm632, %v602, 0
      %v838 = vsel %vm632, %v603, 0
      %v841 = vsel %vm632, %v604, 0
      %v844 = vsel %vm632, %v605, 0
      %v847 = vsel %vm632, %v606, 0
      %v850 = vsel %vm632, %v607, 0
      %v853 = vsel %vm632, %v608, 0
      %v856 = vsel %vm632, %v609, 0
      %v859 = vsel %vm632, %v610, 0
      %v862 = vsel %vm632, %v611, 0
      %v865 = vsel %vm632, %v612, 0
      %v868 = vsel %vm632, %v613, 0
      %v871 = vsel %vm632, %v614, 0
      %v874 = vsel %vm632, %v615, 0
      %v877 = vsel %vm632, %v616, 0
      %v880 = vsel %vm665, %v830, 0
      %882 = vmatprep.subr.bf16.mxu0 0
      %883 = vmatpush1.bf16.msra.mxu0 %v880
      %884 = vmatprep.subr.bf16.mxu0 0
      %885 = vmatpush1.bf16.msra.mxu0 0
      %886 = vmatprep.subr.bf16.mxu0 0
      %887 = vmatpush1.bf16.msra.mxu0 0
      %888 = vmatprep.subr.bf16.mxu0 0
      %889 = vmatpush1.bf16.msra.mxu0 0
      %890 = vmatprep.subr.bf16.mxu0 0
      %891 = vmatpush1.bf16.msra.mxu0 0
      %892 = vmatprep.subr.bf16.mxu0 0
      %893 = vmatpush1.bf16.msra.mxu0 0
      %894 = vmatprep.subr.bf16.mxu0 0
      %895 = vmatpush1.bf16.msra.mxu0 0
      %896 = vmatprep.subr.bf16.mxu0 0
      %897 = vmatpush1.bf16.msra.mxu0 0
      %898 = vmatprep.subr.bf16.mxu0 0
      %899 = vmatpush1.bf16.msra.mxu0 0
      %900 = vmatprep.subr.bf16.mxu0 0
      %901 = vmatpush1.bf16.msra.mxu0 0
      %902 = vmatprep.subr.bf16.mxu0 0
      %903 = vmatpush1.bf16.msra.mxu0 0
      %904 = vmatprep.subr.bf16.mxu0 0
      %905 = vmatpush1.bf16.msra.mxu0 0
      %906 = vmatprep.subr.bf16.mxu0 0
      %907 = vmatpush1.bf16.msra.mxu0 0
      %908 = vmatprep.subr.bf16.mxu0 0
      %909 = vmatpush1.bf16.msra.mxu0 0
      %910 = vmatprep.subr.bf16.mxu0 0
      %911 = vmatpush1.bf16.msra.mxu0 0
      %912 = vmatprep.subr.bf16.mxu0 0
      %913 = vmatpush1.bf16.msra.mxu0 0
      %914 = vmatprep.mubr.bf16.mxu0 0
      %915 = vmatmul.mubr.bf16.gmra.mrb[0].mxu0 %v832
      %v916 = vpop.f32.mrb[0].mxu0
      %v917 = vadd.f32 0.0, %v916
      %v918 = vpop.f32.mrb[0].mxu0
      %v919 = vpop.f32.mrb[0].mxu0
      %v920 = vadd.f32 0.0, %v919
      %v921 = vpop.f32.mrb[0].mxu0
      %922 = vmatprep.mubr.bf16.mxu0 0
      %923 = vmatmul.mubr.bf16.gmra.mrb[0].mxu0 %v835
      %v924 = vpop.f32.mrb[0].mxu0
      %v925 = vadd.f32 0.0, %v924
      %v926 = vpop.f32.mrb[0].mxu0
      %v927 = vpop.f32.mrb[0].mxu0
      %v928 = vadd.f32 0.0, %v927
      %v929 = vpop.f32.mrb[0].mxu0
      %930 = vmatprep.mubr.bf16.mxu0 0
      %931 = vmatmul.mubr.bf16.gmra.mrb[0].mxu0 %v838
      %v932 = vpop.f32.mrb[0].mxu0
      %v933 = vadd.f32 0.0, %v932
      %v934 = vpop.f32.mrb[0].mxu0
      %v935 = vpop.f32.mrb[0].mxu0
      %v936 = vadd.f32 0.0, %v935
      %v937 = vpop.f32.mrb[0].mxu0
      %938 = vmatprep.mubr.bf16.mxu0 0
      %939 = vmatmul.mubr.bf16.gmra.mrb[0].mxu0 %v841
      %v940 = vpop.f32.mrb[0].mxu0
      %v941 = vadd.f32 0.0, %v940
      %v942 = vpop.f32.mrb[0].mxu0
      %v943 = vpop.f32.mrb[0].mxu0
      %v944 = vadd.f32 0.0, %v943
      %v945 = vpop.f32.mrb[0].mxu0
      %946 = vmatprep.mubr.bf16.mxu0 0
      %947 = vmatmul.mubr.bf16.gmra.mrb[0].mxu0 %v844
      %v948 = vpop.f32.mrb[0].mxu0
      %v949 = vadd.f32 0.0, %v948
      %v950 = vpop.f32.mrb[0].mxu0
      %v951 = vpop.f32.mrb[0].mxu0
      %v952 = vadd.f32 0.0, %v951
      %v953 = vpop.f32.mrb[0].mxu0
      %954 = vmatprep.mubr.bf16.mxu0 0
      %955 = vmatmul.mubr.bf16.gmra.mrb[0].mxu0 %v847
      %v956 = vpop.f32.mrb[0].mxu0
      %v957 = vadd.f32 0.0, %v956
      %v958 = vpop.f32.mrb[0].mxu0
      %v959 = vpop.f32.mrb[0].mxu0
      %v960 = vadd.f32 0.0, %v959
      %v961 = vpop.f32.mrb[0].mxu0
      %962 = vmatprep.mubr.bf16.mxu0 0
      %963 = vmatmul.mubr.bf16.gmra.mrb[0].mxu0 %v850
      %v964 = vpop.f32.mrb[0].mxu0
      %v965 = vadd.f32 0.0, %v964
      %v966 = vpop.f32.mrb[0].mxu0
      %v967 = vpop.f32.mrb[0].mxu0
      %v968 = vadd.f32 0.0, %v967
      %v969 = vpop.f32.mrb[0].mxu0
      %970 = vmatprep.mubr.bf16.mxu0 0
      %971 = vmatmul.mubr.bf16.gmra.mrb[0].mxu0 %v853
      %v972 = vpop.f32.mrb[0].mxu0
      %v973 = vadd.f32 0.0, %v972
      %v974 = vpop.f32.mrb[0].mxu0
      %v975 = vpop.f32.mrb[0].mxu0
      %v976 = vadd.f32 0.0, %v975
      %v977 = vpop.f32.mrb[0].mxu0
      %978 = vmatprep.mubr.bf16.mxu0 0
      %979 = vmatmul.mubr.bf16.gmra.mrb[0].mxu0 %v856
      %v980 = vpop.f32.mrb[0].mxu0
      %v981 = vadd.f32 0.0, %v980
      %v982 = vpop.f32.mrb[0].mxu0
      %v983 = vpop.f32.mrb[0].mxu0
      %v984 = vadd.f32 0.0, %v983
      %v985 = vpop.f32.mrb[0].mxu0
      %986 = vmatprep.mubr.bf16.mxu0 0
      %987 = vmatmul.mubr.bf16.gmra.mrb[0].mxu0 %v859
      %v988 = vpop.f32.mrb[0].mxu0
      %v989 = vadd.f32 0.0, %v988
      %v990 = vpop.f32.mrb[0].mxu0
      %v991 = vpop.f32.mrb[0].mxu0
      %v992 = vadd.f32 0.0, %v991
      %v993 = vpop.f32.mrb[0].mxu0
      %994 = vmatprep.mubr.bf16.mxu0 0
      %995 = vmatmul.mubr.bf16.gmra.mrb[0].mxu0 %v862
      %v996 = vpop.f32.mrb[0].mxu0
      %v997 = vadd.f32 0.0, %v996
      %v998 = vpop.f32.mrb[0].mxu0
      %v999 = vpop.f32.mrb[0].mxu0
      %v1000 = vadd.f32 0.0, %v999
      %v1001 = vpop.f32.mrb[0].mxu0
      %1002 = vmatprep.mubr.bf16.mxu0 0
      %1003 = vmatmul.mubr.bf16.gmra.mrb[0].mxu0 %v865
      %v1004 = vpop.f32.mrb[0].mxu0
      %v1005 = vadd.f32 0.0, %v1004
      %v1006 = vpop.f32.mrb[0].mxu0
      %v1007 = vpop.f32.mrb[0].mxu0
      %v1008 = vadd.f32 0.0, %v1007
      %v1009 = vpop.f32.mrb[0].mxu0
      %1010 = vmatprep.mubr.bf16.mxu0 0
      %1011 = vmatmul.mubr.bf16.gmra.mrb[0].mxu0 %v868
      %v1012 = vpop.f32.mrb[0].mxu0
      %v1013 = vadd.f32 0.0, %v1012
      %v1014 = vpop.f32.mrb[0].mxu0
      %v1015 = vpop.f32.mrb[0].mxu0
      %v1016 = vadd.f32 0.0, %v1015
      %v1017 = vpop.f32.mrb[0].mxu0
      %1018 = vmatprep.mubr.bf16.mxu0 0
      %1019 = vmatmul.mubr.bf16.gmra.mrb[0].mxu0 %v871
      %v1020 = vpop.f32.mrb[0].mxu0
      %v1021 = vadd.f32 0.0, %v1020
      %v1022 = vpop.f32.mrb[0].mxu0
      %v1023 = vpop.f32.mrb[0].mxu0
      %v1024 = vadd.f32 0.0, %v1023
      %v1025 = vpop.f32.mrb[0].mxu0
      %1026 = vmatprep.mubr.bf16.mxu0 0
      %1027 = vmatmul.mubr.bf16.gmra.mrb[0].mxu0 %v874
      %v1028 = vpop.f32.mrb[0].mxu0
      %v1029 = vadd.f32 0.0, %v1028
      %v1030 = vpop.f32.mrb[0].mxu0
      %v1031 = vpop.f32.mrb[0].mxu0
      %v1032 = vadd.f32 0.0, %v1031
      %v1033 = vpop.f32.mrb[0].mxu0
      %1034 = vmatprep.mubr.bf16.mxu0 0
      %1035 = vmatmul.mubr.bf16.gmra.mrb[0].mxu0 %v877
      %v1036 = vpop.f32.mrb[0].mxu0
      %v1037 = vadd.f32 0.0, %v1036
      %v1038 = vpop.f32.mrb[0].mxu0
      %v1039 = vpop.f32.mrb[0].mxu0
      %v1040 = vadd.f32 0.0, %v1039
      %v1041 = vpop.f32.mrb[0].mxu0
      %1042 = vdwg.mxu0
      %v1043 = vld [vmem:[%s4] sm:$0x3]
      %v1044 = vsel %vm632, %v621, 0
      %v1047 = vsel %vm665, %v1043, 0
      %1049 = vmatprep.subr.bf16.mxu0 0
      %1050 = vmatpush1.bf16.msra.mxu0 %v1047
      %1051 = vmatprep.subr.bf16.mxu0 0
      %1052 = vmatpush1.bf16.msra.mxu0 0
      %1053 = vmatprep.subr.bf16.mxu0 0
      %1054 = vmatpush1.bf16.msra.mxu0 0
      %1055 = vmatprep.subr.bf16.mxu0 0
      %1056 = vmatpush1.bf16.msra.mxu0 0
      %1057 = vmatprep.subr.bf16.mxu0 0
      %1058 = vmatpush1.bf16.msra.mxu0 0
      %1059 = vmatprep.subr.bf16.mxu0 0
      %1060 = vmatpush1.bf16.msra.mxu0 0
      %1061 = vmatprep.subr.bf16.mxu0 0
      %1062 = vmatpush1.bf16.msra.mxu0 0
      %1063 = vmatprep.subr.bf16.mxu0 0
      %1064 = vmatpush1.bf16.msra.mxu0 0
      %1065 = vmatprep.subr.bf16.mxu0 0
      %1066 = vmatpush1.bf16.msra.mxu0 0
      %1067 = vmatprep.subr.bf16.mxu0 0
      %1068 = vmatpush1.bf16.msra.mxu0 0
      %1069 = vmatprep.subr.bf16.mxu0 0
      %1070 = vmatpush1.bf16.msra.mxu0 0
      %1071 = vmatprep.subr.bf16.mxu0 0
      %1072 = vmatpush1.bf16.msra.mxu0 0
      %1073 = vmatprep.subr.bf16.mxu0 0
      %1074 = vmatpush1.bf16.msra.mxu0 0
      %1075 = vmatprep.subr.bf16.mxu0 0
      %1076 = vmatpush1.bf16.msra.mxu0 0
      %1077 = vmatprep.subr.bf16.mxu0 0
      %1078 = vmatpush1.bf16.msra.mxu0 0
      %1079 = vmatprep.subr.bf16.mxu0 0
      %1080 = vmatpush1.bf16.msra.mxu0 0
      %1081 = vmatprep.mubr.bf16.mxu0 0
      %1082 = vmatmul.mubr.bf16.gmra.mrb[0].mxu0 %v635
      %v1083 = vpop.f32.mrb[0].mxu0
      %v1084 = vadd.f32 0.0, %v1083
      %v1085 = vpop.f32.mrb[0].mxu0
      %v1086 = vpop.f32.mrb[0].mxu0
      %v1087 = vadd.f32 0.0, %v1086
      %v1088 = vpop.f32.mrb[0].mxu0
      %1089 = vmatprep.mubr.bf16.mxu0 0
      %1090 = vmatmul.mubr.bf16.gmra.mrb[0].mxu0 %v637
      %v1091 = vpop.f32.mrb[0].mxu0
      %v1092 = vadd.f32 0.0, %v1091
      %v1093 = vpop.f32.mrb[0].mxu0
      %v1094 = vpop.f32.mrb[0].mxu0
      %v1095 = vadd.f32 0.0, %v1094
      %v1096 = vpop.f32.mrb[0].mxu0
      %1097 = vmatprep.mubr.bf16.mxu0 0
      %1098 = vmatmul.mubr.bf16.gmra.mrb[0].mxu0 %v639
      %v1099 = vpop.f32.mrb[0].mxu0
      %v1100 = vadd.f32 0.0, %v1099
      %v1101 = vpop.f32.mrb[0].mxu0
      %v1102 = vpop.f32.mrb[0].mxu0
      %v1103 = vadd.f32 0.0, %v1102
      %v1104 = vpop.f32.mrb[0].mxu0
      %1105 = vmatprep.mubr.bf16.mxu0 0
      %1106 = vmatmul.mubr.bf16.gmra.mrb[0].mxu0 %v641
      %v1107 = vpop.f32.mrb[0].mxu0
      %v1108 = vadd.f32 0.0, %v1107
      %v1109 = vpop.f32.mrb[0].mxu0
      %v1110 = vpop.f32.mrb[0].mxu0
      %v1111 = vadd.f32 0.0, %v1110
      %v1112 = vpop.f32.mrb[0].mxu0
      %1113 = vmatprep.mubr.bf16.mxu0 0
      %1114 = vmatmul.mubr.bf16.gmra.mrb[0].mxu0 %v643
      %v1115 = vpop.f32.mrb[0].mxu0
      %v1116 = vadd.f32 0.0, %v1115
      %v1117 = vpop.f32.mrb[0].mxu0
      %v1118 = vpop.f32.mrb[0].mxu0
      %v1119 = vadd.f32 0.0, %v1118
      %v1120 = vpop.f32.mrb[0].mxu0
      %1121 = vmatprep.mubr.bf16.mxu0 0
      %1122 = vmatmul.mubr.bf16.gmra.mrb[0].mxu0 %v645
      %v1123 = vpop.f32.mrb[0].mxu0
      %v1124 = vadd.f32 0.0, %v1123
      %v1125 = vpop.f32.mrb[0].mxu0
      %v1126 = vpop.f32.mrb[0].mxu0
      %v1127 = vadd.f32 0.0, %v1126
      %v1128 = vpop.f32.mrb[0].mxu0
      %1129 = vmatprep.mubr.bf16.mxu0 0
      %1130 = vmatmul.mubr.bf16.gmra.mrb[0].mxu0 %v647
      %v1131 = vpop.f32.mrb[0].mxu0
      %v1132 = vadd.f32 0.0, %v1131
      %v1133 = vpop.f32.mrb[0].mxu0
      %v1134 = vpop.f32.mrb[0].mxu0
      %v1135 = vadd.f32 0.0, %v1134
      %v1136 = vpop.f32.mrb[0].mxu0
      %1137 = vmatprep.mubr.bf16.mxu0 0
      %1138 = vmatmul.mubr.bf16.gmra.mrb[0].mxu0 %v649
      %v1139 = vpop.f32.mrb[0].mxu0
      %v1140 = vadd.f32 0.0, %v1139
      %v1141 = vpop.f32.mrb[0].mxu0
      %v1142 = vpop.f32.mrb[0].mxu0
      %v1143 = vadd.f32 0.0, %v1142
      %v1144 = vpop.f32.mrb[0].mxu0
      %1145 = vmatprep.mubr.bf16.mxu0 0
      %1146 = vmatmul.mubr.bf16.gmra.mrb[0].mxu0 %v651
      %v1147 = vpop.f32.mrb[0].mxu0
      %v1148 = vadd.f32 0.0, %v1147
      %v1149 = vpop.f32.mrb[0].mxu0
      %v1150 = vpop.f32.mrb[0].mxu0
      %v1151 = vadd.f32 0.0, %v1150
      %v1152 = vpop.f32.mrb[0].mxu0
      %1153 = vmatprep.mubr.bf16.mxu0 0
      %1154 = vmatmul.mubr.bf16.gmra.mrb[0].mxu0 %v653
      %v1155 = vpop.f32.mrb[0].mxu0
      %v1156 = vadd.f32 0.0, %v1155
      %v1157 = vpop.f32.mrb[0].mxu0
      %v1158 = vpop.f32.mrb[0].mxu0
      %v1159 = vadd.f32 0.0, %v1158
      %v1160 = vpop.f32.mrb[0].mxu0
      %1161 = vmatprep.mubr.bf16.mxu0 0
      %1162 = vmatmul.mubr.bf16.gmra.mrb[0].mxu0 %v655
      %v1163 = vpop.f32.mrb[0].mxu0
      %v1164 = vadd.f32 0.0, %v1163
      %v1165 = vpop.f32.mrb[0].mxu0
      %v1166 = vpop.f32.mrb[0].mxu0
      %v1167 = vadd.f32 0.0, %v1166
      %v1168 = vpop.f32.mrb[0].mxu0
      %1169 = vmatprep.mubr.bf16.mxu0 0
      %1170 = vmatmul.mubr.bf16.gmra.mrb[0].mxu0 %v657
      %v1171 = vpop.f32.mrb[0].mxu0
      %v1172 = vadd.f32 0.0, %v1171
      %v1173 = vpop.f32.mrb[0].mxu0
      %v1174 = vpop.f32.mrb[0].mxu0
      %v1175 = vadd.f32 0.0, %v1174
      %v1176 = vpop.f32.mrb[0].mxu0
      %1177 = vmatprep.mubr.bf16.mxu0 0
      %1178 = vmatmul.mubr.bf16.gmra.mrb[0].mxu0 %v659
      %v1179 = vpop.f32.mrb[0].mxu0
      %v1180 = vadd.f32 0.0, %v1179
      %v1181 = vpop.f32.mrb[0].mxu0
      %v1182 = vpop.f32.mrb[0].mxu0
      %v1183 = vadd.f32 0.0, %v1182
      %v1184 = vpop.f32.mrb[0].mxu0
      %1185 = vmatprep.mubr.bf16.mxu0 0
      %1186 = vmatmul.mubr.bf16.gmra.mrb[0].mxu0 %v661
      %v1187 = vpop.f32.mrb[0].mxu0
      %v1188 = vadd.f32 0.0, %v1187
      %v1189 = vpop.f32.mrb[0].mxu0
      %v1190 = vpop.f32.mrb[0].mxu0
      %v1191 = vadd.f32 0.0, %v1190
      %v1192 = vpop.f32.mrb[0].mxu0
      %1193 = vmatprep.mubr.bf16.mxu0 0
      %1194 = vmatmul.mubr.bf16.gmra.mrb[0].mxu0 %v663
      %v1195 = vpop.f32.mrb[0].mxu0
      %v1196 = vadd.f32 0.0, %v1195
      %v1197 = vpop.f32.mrb[0].mxu0
      %v1198 = vpop.f32.mrb[0].mxu0
      %v1199 = vadd.f32 0.0, %v1198
      %v1200 = vpop.f32.mrb[0].mxu0
      %1201 = vmatprep.mubr.bf16.mxu0 0
      %1202 = vmatmul.mubr.bf16.gmra.mrb[0].mxu0 %v1044
      %v1203 = vpop.f32.mrb[0].mxu0
      %v1204 = vadd.f32 0.0, %v1203
      %v1205 = vpop.f32.mrb[0].mxu0
      %v1206 = vpop.f32.mrb[0].mxu0
      %v1207 = vadd.f32 0.0, %v1206
      %v1208 = vpop.f32.mrb[0].mxu0
      %1209 = vdwg.mxu0
      %v1210 = vld [vmem:[%s5] sm:$0x3]
      %v1212 = vsel %vm632, %v630, 0
      %v1215 = vsel %vm665, %v1210, 0
      %1217 = vmatprep.subr.bf16.mxu0 0
      %1218 = vmatpush1.bf16.msra.mxu0 %v1215
      %1219 = vmatprep.subr.bf16.mxu0 0
      %1220 = vmatpush1.bf16.msra.mxu0 0
      %1221 = vmatprep.subr.bf16.mxu0 0
      %1222 = vmatpush1.bf16.msra.mxu0 0
      %1223 = vmatprep.subr.bf16.mxu0 0
      %1224 = vmatpush1.bf16.msra.mxu0 0
      %1225 = vmatprep.subr.bf16.mxu0 0
      %1226 = vmatpush1.bf16.msra.mxu0 0
      %1227 = vmatprep.subr.bf16.mxu0 0
      %1228 = vmatpush1.bf16.msra.mxu0 0
      %1229 = vmatprep.subr.bf16.mxu0 0
      %1230 = vmatpush1.bf16.msra.mxu0 0
      %1231 = vmatprep.subr.bf16.mxu0 0
      %1232 = vmatpush1.bf16.msra.mxu0 0
      %1233 = vmatprep.subr.bf16.mxu0 0
      %1234 = vmatpush1.bf16.msra.mxu0 0
      %1235 = vmatprep.subr.bf16.mxu0 0
      %1236 = vmatpush1.bf16.msra.mxu0 0
      %1237 = vmatprep.subr.bf16.mxu0 0
      %1238 = vmatpush1.bf16.msra.mxu0 0
      %1239 = vmatprep.subr.bf16.mxu0 0
      %1240 = vmatpush1.bf16.msra.mxu0 0
      %1241 = vmatprep.subr.bf16.mxu0 0
      %1242 = vmatpush1.bf16.msra.mxu0 0
      %1243 = vmatprep.subr.bf16.mxu0 0
      %1244 = vmatpush1.bf16.msra.mxu0 0
      %1245 = vmatprep.subr.bf16.mxu0 0
      %1246 = vmatpush1.bf16.msra.mxu0 0
      %1247 = vmatprep.subr.bf16.mxu0 0
      %1248 = vmatpush1.bf16.msra.mxu0 0
      %1249 = vmatprep.mubr.bf16.mxu0 0
      %1250 = vmatmul.mubr.bf16.gmra.mrb[0].mxu0 %v835
      %v1251 = vpop.f32.mrb[0].mxu0
      %v1252 = vadd.f32 0.0, %v1251
      %v1253 = vpop.f32.mrb[0].mxu0
      %v1254 = vpop.f32.mrb[0].mxu0
      %v1255 = vadd.f32 0.0, %v1254
      %v1256 = vpop.f32.mrb[0].mxu0
      %1257 = vmatprep.mubr.bf16.mxu0 0
      %1258 = vmatmul.mubr.bf16.gmra.mrb[0].mxu0 %v838
      %v1259 = vpop.f32.mrb[0].mxu0
      %v1260 = vadd.f32 0.0, %v1259
      %v1261 = vpop.f32.mrb[0].mxu0
      %v1262 = vpop.f32.mrb[0].mxu0
      %v1263 = vadd.f32 0.0, %v1262
      %v1264 = vpop.f32.mrb[0].mxu0
      %1265 = vmatprep.mubr.bf16.mxu0 0
      %1266 = vmatmul.mubr.bf16.gmra.mrb[0].mxu0 %v841
      %v1267 = vpop.f32.mrb[0].mxu0
      %v1268 = vadd.f32 0.0, %v1267
      %v1269 = vpop.f32.mrb[0].mxu0
      %v1270 = vpop.f32.mrb[0].mxu0
      %v1271 = vadd.f32 0.0, %v1270
      %v1272 = vpop.f32.mrb[0].mxu0
      %1273 = vmatprep.mubr.bf16.mxu0 0
      %1274 = vmatmul.mubr.bf16.gmra.mrb[0].mxu0 %v844
      %v1275 = vpop.f32.mrb[0].mxu0
      %v1276 = vadd.f32 0.0, %v1275
      %v1277 = vpop.f32.mrb[0].mxu0
      %v1278 = vpop.f32.mrb[0].mxu0
      %v1279 = vadd.f32 0.0, %v1278
      %v1280 = vpop.f32.mrb[0].mxu0
      %1281 = vmatprep.mubr.bf16.mxu0 0
      %1282 = vmatmul.mubr.bf16.gmra.mrb[0].mxu0 %v847
      %v1283 = vpop.f32.mrb[0].mxu0
      %v1284 = vadd.f32 0.0, %v1283
      %v1285 = vpop.f32.mrb[0].mxu0
      %v1286 = vpop.f32.mrb[0].mxu0
      %v1287 = vadd.f32 0.0, %v1286
      %v1288 = vpop.f32.mrb[0].mxu0
      %1289 = vmatprep.mubr.bf16.mxu0 0
      %1290 = vmatmul.mubr.bf16.gmra.mrb[0].mxu0 %v850
      %v1291 = vpop.f32.mrb[0].mxu0
      %v1292 = vadd.f32 0.0, %v1291
      %v1293 = vpop.f32.mrb[0].mxu0
      %v1294 = vpop.f32.mrb[0].mxu0
      %v1295 = vadd.f32 0.0, %v1294
      %v1296 = vpop.f32.mrb[0].mxu0
      %1297 = vmatprep.mubr.bf16.mxu0 0
      %1298 = vmatmul.mubr.bf16.gmra.mrb[0].mxu0 %v853
      %v1299 = vpop.f32.mrb[0].mxu0
      %v1300 = vadd.f32 0.0, %v1299
      %v1301 = vpop.f32.mrb[0].mxu0
      %v1302 = vpop.f32.mrb[0].mxu0
      %v1303 = vadd.f32 0.0, %v1302
      %v1304 = vpop.f32.mrb[0].mxu0
      %1305 = vmatprep.mubr.bf16.mxu0 0
      %1306 = vmatmul.mubr.bf16.gmra.mrb[0].mxu0 %v856
      %v1307 = vpop.f32.mrb[0].mxu0
      %v1308 = vadd.f32 0.0, %v1307
      %v1309 = vpop.f32.mrb[0].mxu0
      %v1310 = vpop.f32.mrb[0].mxu0
      %v1311 = vadd.f32 0.0, %v1310
      %v1312 = vpop.f32.mrb[0].mxu0
      %1313 = vmatprep.mubr.bf16.mxu0 0
      %1314 = vmatmul.mubr.bf16.gmra.mrb[0].mxu0 %v859
      %v1315 = vpop.f32.mrb[0].mxu0
      %v1316 = vadd.f32 0.0, %v1315
      %v1317 = vpop.f32.mrb[0].mxu0
      %v1318 = vpop.f32.mrb[0].mxu0
      %v1319 = vadd.f32 0.0, %v1318
      %v1320 = vpop.f32.mrb[0].mxu0
      %1321 = vmatprep.mubr.bf16.mxu0 0
      %1322 = vmatmul.mubr.bf16.gmra.mrb[0].mxu0 %v862
      %v1323 = vpop.f32.mrb[0].mxu0
      %v1324 = vadd.f32 0.0, %v1323
      %v1325 = vpop.f32.mrb[0].mxu0
      %v1326 = vpop.f32.mrb[0].mxu0
      %v1327 = vadd.f32 0.0, %v1326
      %v1328 = vpop.f32.mrb[0].mxu0
      %1329 = vmatprep.mubr.bf16.mxu0 0
      %1330 = vmatmul.mubr.bf16.gmra.mrb[0].mxu0 %v865
      %v1331 = vpop.f32.mrb[0].mxu0
      %v1332 = vadd.f32 0.0, %v1331
      %v1333 = vpop.f32.mrb[0].mxu0
      %v1334 = vpop.f32.mrb[0].mxu0
      %v1335 = vadd.f32 0.0, %v1334
      %v1336 = vpop.f32.mrb[0].mxu0
      %1337 = vmatprep.mubr.bf16.mxu0 0
      %1338 = vmatmul.mubr.bf16.gmra.mrb[0].mxu0 %v868
      %v1339 = vpop.f32.mrb[0].mxu0
      %v1340 = vadd.f32 0.0, %v1339
      %v1341 = vpop.f32.mrb[0].mxu0
      %v1342 = vpop.f32.mrb[0].mxu0
      %v1343 = vadd.f32 0.0, %v1342
      %v1344 = vpop.f32.mrb[0].mxu0
      %1345 = vmatprep.mubr.bf16.mxu0 0
      %1346 = vmatmul.mubr.bf16.gmra.mrb[0].mxu0 %v871
      %v1347 = vpop.f32.mrb[0].mxu0
      %v1348 = vadd.f32 0.0, %v1347
      %v1349 = vpop.f32.mrb[0].mxu0
      %v1350 = vpop.f32.mrb[0].mxu0
      %v1351 = vadd.f32 0.0, %v1350
      %v1352 = vpop.f32.mrb[0].mxu0
      %1353 = vmatprep.mubr.bf16.mxu0 0
      %1354 = vmatmul.mubr.bf16.gmra.mrb[0].mxu0 %v874
      %v1355 = vpop.f32.mrb[0].mxu0
      %v1356 = vadd.f32 0.0, %v1355
      %v1357 = vpop.f32.mrb[0].mxu0
      %v1358 = vpop.f32.mrb[0].mxu0
      %v1359 = vadd.f32 0.0, %v1358
      %v1360 = vpop.f32.mrb[0].mxu0
      %1361 = vmatprep.mubr.bf16.mxu0 0
      %1362 = vmatmul.mubr.bf16.gmra.mrb[0].mxu0 %v877
      %v1363 = vpop.f32.mrb[0].mxu0
      %v1364 = vadd.f32 0.0, %v1363
      %v1365 = vpop.f32.mrb[0].mxu0
      %v1366 = vpop.f32.mrb[0].mxu0
      %v1367 = vadd.f32 0.0, %v1366
      %v1368 = vpop.f32.mrb[0].mxu0
      %1369 = vmatprep.mubr.bf16.mxu0 0
      %1370 = vmatmul.mubr.bf16.gmra.mrb[0].mxu0 %v1212
      %v1371 = vpop.f32.mrb[0].mxu0
      %v1372 = vadd.f32 0.0, %v1371
      %v1373 = vpop.f32.mrb[0].mxu0
      %v1374 = vpop.f32.mrb[0].mxu0
      %v1375 = vadd.f32 0.0, %v1374
      %v1376 = vpop.f32.mrb[0].mxu0
      %1377 = vdwg.mxu0
      %1410 = vrot.lane.b32.xlu0 %v917, 8
      %v1411 = vpop.permute.xlu0 %1410
      %1412 = vrot.lane.b32.xlu0 %v920, 8
      %v1413 = vpop.permute.xlu0 %1412
      %1414 = vrot.lane.b32.xlu0 %v925, 8
      %v1415 = vpop.permute.xlu0 %1414
      %1416 = vrot.lane.b32.xlu0 %v928, 8
      %v1417 = vpop.permute.xlu0 %1416
      %1418 = vrot.lane.b32.xlu0 %v933, 8
      %v1419 = vpop.permute.xlu0 %1418
      %1420 = vrot.lane.b32.xlu0 %v936, 8
      %v1421 = vpop.permute.xlu0 %1420
      %1422 = vrot.lane.b32.xlu0 %v941, 8
      %v1423 = vpop.permute.xlu0 %1422
      %1424 = vrot.lane.b32.xlu0 %v944, 8
      %v1425 = vpop.permute.xlu0 %1424
      %1426 = vrot.lane.b32.xlu0 %v949, 8
      %v1427 = vpop.permute.xlu0 %1426
      %1428 = vrot.lane.b32.xlu0 %v952, 8
      %v1429 = vpop.permute.xlu0 %1428
      %1430 = vrot.lane.b32.xlu0 %v957, 8
      %v1431 = vpop.permute.xlu0 %1430
      %1432 = vrot.lane.b32.xlu0 %v960, 8
      %v1433 = vpop.permute.xlu0 %1432
      %1434 = vrot.lane.b32.xlu0 %v965, 8
      %v1435 = vpop.permute.xlu0 %1434
      %1436 = vrot.lane.b32.xlu0 %v968, 8
      %v1437 = vpop.permute.xlu0 %1436
      %1438 = vrot.lane.b32.xlu0 %v973, 8
      %v1439 = vpop.permute.xlu0 %1438
      %1440 = vrot.lane.b32.xlu0 %v976, 8
      %v1441 = vpop.permute.xlu0 %1440
      %1442 = vrot.lane.b32.xlu0 %v981, 8
      %v1443 = vpop.permute.xlu0 %1442
      %1444 = vrot.lane.b32.xlu0 %v984, 8
      %v1445 = vpop.permute.xlu0 %1444
      %1446 = vrot.lane.b32.xlu0 %v989, 8
      %v1447 = vpop.permute.xlu0 %1446
      %1448 = vrot.lane.b32.xlu0 %v992, 8
      %v1449 = vpop.permute.xlu0 %1448
      %1450 = vrot.lane.b32.xlu0 %v997, 8
      %v1451 = vpop.permute.xlu0 %1450
      %1452 = vrot.lane.b32.xlu0 %v1000, 8
      %v1453 = vpop.permute.xlu0 %1452
      %1454 = vrot.lane.b32.xlu0 %v1005, 8
      %v1455 = vpop.permute.xlu0 %1454
      %1456 = vrot.lane.b32.xlu0 %v1008, 8
      %v1457 = vpop.permute.xlu0 %1456
      %1458 = vrot.lane.b32.xlu0 %v1013, 8
      %v1459 = vpop.permute.xlu0 %1458
      %1460 = vrot.lane.b32.xlu0 %v1016, 8
      %v1461 = vpop.permute.xlu0 %1460
      %1462 = vrot.lane.b32.xlu0 %v1021, 8
      %v1463 = vpop.permute.xlu0 %1462
      %1464 = vrot.lane.b32.xlu0 %v1024, 8
      %v1465 = vpop.permute.xlu0 %1464
      %1466 = vrot.lane.b32.xlu0 %v1029, 8
      %v1467 = vpop.permute.xlu0 %1466
      %1468 = vrot.lane.b32.xlu0 %v1032, 8
      %v1469 = vpop.permute.xlu0 %1468
      %1470 = vrot.lane.b32.xlu0 %v1037, 8
      %v1471 = vpop.permute.xlu0 %1470
      %1472 = vrot.lane.b32.xlu0 %v1040, 8
      %v1473 = vpop.permute.xlu0 %1472
      %v1506 = vadd.f32 %v704, %v1411
      %v1507 = vadd.f32 %v707, %v1413
      %v1508 = vadd.f32 %v712, %v1415
      %v1509 = vadd.f32 %v715, %v1417
      %v1510 = vadd.f32 %v720, %v1419
      %v1511 = vadd.f32 %v723, %v1421
      %v1512 = vadd.f32 %v728, %v1423
      %v1513 = vadd.f32 %v731, %v1425
      %v1514 = vadd.f32 %v736, %v1427
      %v1515 = vadd.f32 %v739, %v1429
      %v1516 = vadd.f32 %v744, %v1431
      %v1517 = vadd.f32 %v747, %v1433
      %v1518 = vadd.f32 %v752, %v1435
      %v1519 = vadd.f32 %v755, %v1437
      %v1520 = vadd.f32 %v760, %v1439
      %v1521 = vadd.f32 %v763, %v1441
      %v1522 = vadd.f32 %v768, %v1443
      %v1523 = vadd.f32 %v771, %v1445
      %v1524 = vadd.f32 %v776, %v1447
      %v1525 = vadd.f32 %v779, %v1449
      %v1526 = vadd.f32 %v784, %v1451
      %v1527 = vadd.f32 %v787, %v1453
      %v1528 = vadd.f32 %v792, %v1455
      %v1529 = vadd.f32 %v795, %v1457
      %v1530 = vadd.f32 %v800, %v1459
      %v1531 = vadd.f32 %v803, %v1461
      %v1532 = vadd.f32 %v808, %v1463
      %v1533 = vadd.f32 %v811, %v1465
      %v1534 = vadd.f32 %v816, %v1467
      %v1535 = vadd.f32 %v819, %v1469
      %v1536 = vadd.f32 %v824, %v1471
      %v1537 = vadd.f32 %v827, %v1473
      %1570 = vrot.lane.b32.xlu0 %v1084, 16
      %v1571 = vpop.permute.xlu0 %1570
      %1572 = vrot.lane.b32.xlu0 %v1087, 16
      %v1573 = vpop.permute.xlu0 %1572
      %1574 = vrot.lane.b32.xlu0 %v1092, 16
      %v1575 = vpop.permute.xlu0 %1574
      %1576 = vrot.lane.b32.xlu0 %v1095, 16
      %v1577 = vpop.permute.xlu0 %1576
      %1578 = vrot.lane.b32.xlu0 %v1100, 16
      %v1579 = vpop.permute.xlu0 %1578
      %1580 = vrot.lane.b32.xlu0 %v1103, 16
      %v1581 = vpop.permute.xlu0 %1580
      %1582 = vrot.lane.b32.xlu0 %v1108, 16
      %v1583 = vpop.permute.xlu0 %1582
      %1584 = vrot.lane.b32.xlu0 %v1111, 16
      %v1585 = vpop.permute.xlu0 %1584
      %1586 = vrot.lane.b32.xlu0 %v1116, 16
      %v1587 = vpop.permute.xlu0 %1586
      %1588 = vrot.lane.b32.xlu0 %v1119, 16
      %v1589 = vpop.permute.xlu0 %1588
      %1590 = vrot.lane.b32.xlu0 %v1124, 16
      %v1591 = vpop.permute.xlu0 %1590
      %1592 = vrot.lane.b32.xlu0 %v1127, 16
      %v1593 = vpop.permute.xlu0 %1592
      %1594 = vrot.lane.b32.xlu0 %v1132, 16
      %v1595 = vpop.permute.xlu0 %1594
      %1596 = vrot.lane.b32.xlu0 %v1135, 16
      %v1597 = vpop.permute.xlu0 %1596
      %1598 = vrot.lane.b32.xlu0 %v1140, 16
      %v1599 = vpop.permute.xlu0 %1598
      %1600 = vrot.lane.b32.xlu0 %v1143, 16
      %v1601 = vpop.permute.xlu0 %1600
      %1602 = vrot.lane.b32.xlu0 %v1148, 16
      %v1603 = vpop.permute.xlu0 %1602
      %1604 = vrot.lane.b32.xlu0 %v1151, 16
      %v1605 = vpop.permute.xlu0 %1604
      %1606 = vrot.lane.b32.xlu0 %v1156, 16
      %v1607 = vpop.permute.xlu0 %1606
      %1608 = vrot.lane.b32.xlu0 %v1159, 16
      %v1609 = vpop.permute.xlu0 %1608
      %1610 = vrot.lane.b32.xlu0 %v1164, 16
      %v1611 = vpop.permute.xlu0 %1610
      %1612 = vrot.lane.b32.xlu0 %v1167, 16
      %v1613 = vpop.permute.xlu0 %1612
      %1614 = vrot.lane.b32.xlu0 %v1172, 16
      %v1615 = vpop.permute.xlu0 %1614
      %1616 = vrot.lane.b32.xlu0 %v1175, 16
      %v1617 = vpop.permute.xlu0 %1616
      %1618 = vrot.lane.b32.xlu0 %v1180, 16
      %v1619 = vpop.permute.xlu0 %1618
      %1620 = vrot.lane.b32.xlu0 %v1183, 16
      %v1621 = vpop.permute.xlu0 %1620
      %1622 = vrot.lane.b32.xlu0 %v1188, 16
      %v1623 = vpop.permute.xlu0 %1622
      %1624 = vrot.lane.b32.xlu0 %v1191, 16
      %v1625 = vpop.permute.xlu0 %1624
      %1626 = vrot.lane.b32.xlu0 %v1196, 16
      %v1627 = vpop.permute.xlu0 %1626
      %1628 = vrot.lane.b32.xlu0 %v1199, 16
      %v1629 = vpop.permute.xlu0 %1628
      %1630 = vrot.lane.b32.xlu0 %v1204, 16
      %v1631 = vpop.permute.xlu0 %1630
      %1632 = vrot.lane.b32.xlu0 %v1207, 16
      %v1633 = vpop.permute.xlu0 %1632
      %v1666 = vadd.f32 %v704, %v1571
      %v1667 = vadd.f32 %v707, %v1573
      %v1668 = vadd.f32 %v712, %v1575
      %v1669 = vadd.f32 %v715, %v1577
      %v1670 = vadd.f32 %v720, %v1579
      %v1671 = vadd.f32 %v723, %v1581
      %v1672 = vadd.f32 %v728, %v1583
      %v1673 = vadd.f32 %v731, %v1585
      %v1674 = vadd.f32 %v736, %v1587
      %v1675 = vadd.f32 %v739, %v1589
      %v1676 = vadd.f32 %v744, %v1591
      %v1677 = vadd.f32 %v747, %v1593
      %v1678 = vadd.f32 %v752, %v1595
      %v1679 = vadd.f32 %v755, %v1597
      %v1680 = vadd.f32 %v760, %v1599
      %v1681 = vadd.f32 %v763, %v1601
      %v1682 = vadd.f32 %v768, %v1603
      %v1683 = vadd.f32 %v771, %v1605
      %v1684 = vadd.f32 %v776, %v1607
      %v1685 = vadd.f32 %v779, %v1609
      %v1686 = vadd.f32 %v784, %v1611
      %v1687 = vadd.f32 %v787, %v1613
      %v1688 = vadd.f32 %v792, %v1615
      %v1689 = vadd.f32 %v795, %v1617
      %v1690 = vadd.f32 %v800, %v1619
      %v1691 = vadd.f32 %v803, %v1621
      %v1692 = vadd.f32 %v808, %v1623
      %v1693 = vadd.f32 %v811, %v1625
      %v1694 = vadd.f32 %v816, %v1627
      %v1695 = vadd.f32 %v819, %v1629
      %v1696 = vadd.f32 %v824, %v1631
      %v1697 = vadd.f32 %v827, %v1633
      %1698 = vrot.lane.b32.xlu0 %v917, 16
      %v1699 = vpop.permute.xlu0 %1698
      %1700 = vrot.lane.b32.xlu0 %v920, 16
      %v1701 = vpop.permute.xlu0 %1700
      %1702 = vrot.lane.b32.xlu0 %v925, 16
      %v1703 = vpop.permute.xlu0 %1702
      %1704 = vrot.lane.b32.xlu0 %v928, 16
      %v1705 = vpop.permute.xlu0 %1704
      %1706 = vrot.lane.b32.xlu0 %v933, 16
      %v1707 = vpop.permute.xlu0 %1706
      %1708 = vrot.lane.b32.xlu0 %v936, 16
      %v1709 = vpop.permute.xlu0 %1708
      %1710 = vrot.lane.b32.xlu0 %v941, 16
      %v1711 = vpop.permute.xlu0 %1710
      %1712 = vrot.lane.b32.xlu0 %v944, 16
      %v1713 = vpop.permute.xlu0 %1712
      %1714 = vrot.lane.b32.xlu0 %v949, 16
      %v1715 = vpop.permute.xlu0 %1714
      %1716 = vrot.lane.b32.xlu0 %v952, 16
      %v1717 = vpop.permute.xlu0 %1716
      %1718 = vrot.lane.b32.xlu0 %v957, 16
      %v1719 = vpop.permute.xlu0 %1718
      %1720 = vrot.lane.b32.xlu0 %v960, 16
      %v1721 = vpop.permute.xlu0 %1720
      %1722 = vrot.lane.b32.xlu0 %v965, 16
      %v1723 = vpop.permute.xlu0 %1722
      %1724 = vrot.lane.b32.xlu0 %v968, 16
      %v1725 = vpop.permute.xlu0 %1724
      %1726 = vrot.lane.b32.xlu0 %v973, 16
      %v1727 = vpop.permute.xlu0 %1726
      %1728 = vrot.lane.b32.xlu0 %v976, 16
      %v1729 = vpop.permute.xlu0 %1728
      %1730 = vrot.lane.b32.xlu0 %v981, 16
      %v1731 = vpop.permute.xlu0 %1730
      %1732 = vrot.lane.b32.xlu0 %v984, 16
      %v1733 = vpop.permute.xlu0 %1732
      %1734 = vrot.lane.b32.xlu0 %v989, 16
      %v1735 = vpop.permute.xlu0 %1734
      %1736 = vrot.lane.b32.xlu0 %v992, 16
      %v1737 = vpop.permute.xlu0 %1736
      %1738 = vrot.lane.b32.xlu0 %v997, 16
      %v1739 = vpop.permute.xlu0 %1738
      %1740 = vrot.lane.b32.xlu0 %v1000, 16
      %v1741 = vpop.permute.xlu0 %1740
      %1742 = vrot.lane.b32.xlu0 %v1005, 16
      %v1743 = vpop.permute.xlu0 %1742
      %1744 = vrot.lane.b32.xlu0 %v1008, 16
      %v1745 = vpop.permute.xlu0 %1744
      %1746 = vrot.lane.b32.xlu0 %v1013, 16
      %v1747 = vpop.permute.xlu0 %1746
      %1748 = vrot.lane.b32.xlu0 %v1016, 16
      %v1749 = vpop.permute.xlu0 %1748
      %1750 = vrot.lane.b32.xlu0 %v1021, 16
      %v1751 = vpop.permute.xlu0 %1750
      %1752 = vrot.lane.b32.xlu0 %v1024, 16
      %v1753 = vpop.permute.xlu0 %1752
      %1754 = vrot.lane.b32.xlu0 %v1029, 16
      %v1755 = vpop.permute.xlu0 %1754
      %1756 = vrot.lane.b32.xlu0 %v1032, 16
      %v1757 = vpop.permute.xlu0 %1756
      %1758 = vrot.lane.b32.xlu0 %v1037, 16
      %v1759 = vpop.permute.xlu0 %1758
      %1760 = vrot.lane.b32.xlu0 %v1040, 16
      %v1761 = vpop.permute.xlu0 %1760
      %v1794 = vadd.f32 %v704, %v1699
      %v1795 = vadd.f32 %v707, %v1701
      %v1796 = vadd.f32 %v712, %v1703
      %v1797 = vadd.f32 %v715, %v1705
      %v1798 = vadd.f32 %v720, %v1707
      %v1799 = vadd.f32 %v723, %v1709
      %v1800 = vadd.f32 %v728, %v1711
      %v1801 = vadd.f32 %v731, %v1713
      %v1802 = vadd.f32 %v736, %v1715
      %v1803 = vadd.f32 %v739, %v1717
      %v1804 = vadd.f32 %v744, %v1719
      %v1805 = vadd.f32 %v747, %v1721
      %v1806 = vadd.f32 %v752, %v1723
      %v1807 = vadd.f32 %v755, %v1725
      %v1808 = vadd.f32 %v760, %v1727
      %v1809 = vadd.f32 %v763, %v1729
      %v1810 = vadd.f32 %v768, %v1731
      %v1811 = vadd.f32 %v771, %v1733
      %v1812 = vadd.f32 %v776, %v1735
      %v1813 = vadd.f32 %v779, %v1737
      %v1814 = vadd.f32 %v784, %v1739
      %v1815 = vadd.f32 %v787, %v1741
      %v1816 = vadd.f32 %v792, %v1743
      %v1817 = vadd.f32 %v795, %v1745
      %v1818 = vadd.f32 %v800, %v1747
      %v1819 = vadd.f32 %v803, %v1749
      %v1820 = vadd.f32 %v808, %v1751
      %v1821 = vadd.f32 %v811, %v1753
      %v1822 = vadd.f32 %v816, %v1755
      %v1823 = vadd.f32 %v819, %v1757
      %v1824 = vadd.f32 %v824, %v1759
      %v1825 = vadd.f32 %v827, %v1761
      %v1826 = vadd.f32 %v1794, %v1571
      %v1827 = vadd.f32 %v1795, %v1573
      %v1828 = vadd.f32 %v1796, %v1575
      %v1829 = vadd.f32 %v1797, %v1577
      %v1830 = vadd.f32 %v1798, %v1579
      %v1831 = vadd.f32 %v1799, %v1581
      %v1832 = vadd.f32 %v1800, %v1583
      %v1833 = vadd.f32 %v1801, %v1585
      %v1834 = vadd.f32 %v1802, %v1587
      %v1835 = vadd.f32 %v1803, %v1589
      %v1836 = vadd.f32 %v1804, %v1591
      %v1837 = vadd.f32 %v1805, %v1593
      %v1838 = vadd.f32 %v1806, %v1595
      %v1839 = vadd.f32 %v1807, %v1597
      %v1840 = vadd.f32 %v1808, %v1599
      %v1841 = vadd.f32 %v1809, %v1601
      %v1842 = vadd.f32 %v1810, %v1603
      %v1843 = vadd.f32 %v1811, %v1605
      %v1844 = vadd.f32 %v1812, %v1607
      %v1845 = vadd.f32 %v1813, %v1609
      %v1846 = vadd.f32 %v1814, %v1611
      %v1847 = vadd.f32 %v1815, %v1613
      %v1848 = vadd.f32 %v1816, %v1615
      %v1849 = vadd.f32 %v1817, %v1617
      %v1850 = vadd.f32 %v1818, %v1619
      %v1851 = vadd.f32 %v1819, %v1621
      %v1852 = vadd.f32 %v1820, %v1623
      %v1853 = vadd.f32 %v1821, %v1625
      %v1854 = vadd.f32 %v1822, %v1627
      %v1855 = vadd.f32 %v1823, %v1629
      %v1856 = vadd.f32 %v1824, %v1631
      %v1857 = vadd.f32 %v1825, %v1633
      %1890 = vrot.lane.b32.xlu0 %v1252, 24
      %v1891 = vpop.permute.xlu0 %1890
      %1892 = vrot.lane.b32.xlu0 %v1255, 24
      %v1893 = vpop.permute.xlu0 %1892
      %1894 = vrot.lane.b32.xlu0 %v1260, 24
      %v1895 = vpop.permute.xlu0 %1894
      %1896 = vrot.lane.b32.xlu0 %v1263, 24
      %v1897 = vpop.permute.xlu0 %1896
      %1898 = vrot.lane.b32.xlu0 %v1268, 24
      %v1899 = vpop.permute.xlu0 %1898
      %1900 = vrot.lane.b32.xlu0 %v1271, 24
      %v1901 = vpop.permute.xlu0 %1900
      %1902 = vrot.lane.b32.xlu0 %v1276, 24
      %v1903 = vpop.permute.xlu0 %1902
      %1904 = vrot.lane.b32.xlu0 %v1279, 24
      %v1905 = vpop.permute.xlu0 %1904
      %1906 = vrot.lane.b32.xlu0 %v1284, 24
      %v1907 = vpop.permute.xlu0 %1906
      %1908 = vrot.lane.b32.xlu0 %v1287, 24
      %v1909 = vpop.permute.xlu0 %1908
      %1910 = vrot.lane.b32.xlu0 %v1292, 24
      %v1911 = vpop.permute.xlu0 %1910
      %1912 = vrot.lane.b32.xlu0 %v1295, 24
      %v1913 = vpop.permute.xlu0 %1912
      %1914 = vrot.lane.b32.xlu0 %v1300, 24
      %v1915 = vpop.permute.xlu0 %1914
      %1916 = vrot.lane.b32.xlu0 %v1303, 24
      %v1917 = vpop.permute.xlu0 %1916
      %1918 = vrot.lane.b32.xlu0 %v1308, 24
      %v1919 = vpop.permute.xlu0 %1918
      %1920 = vrot.lane.b32.xlu0 %v1311, 24
      %v1921 = vpop.permute.xlu0 %1920
      %1922 = vrot.lane.b32.xlu0 %v1316, 24
      %v1923 = vpop.permute.xlu0 %1922
      %1924 = vrot.lane.b32.xlu0 %v1319, 24
      %v1925 = vpop.permute.xlu0 %1924
      %1926 = vrot.lane.b32.xlu0 %v1324, 24
      %v1927 = vpop.permute.xlu0 %1926
      %1928 = vrot.lane.b32.xlu0 %v1327, 24
      %v1929 = vpop.permute.xlu0 %1928
      %1930 = vrot.lane.b32.xlu0 %v1332, 24
      %v1931 = vpop.permute.xlu0 %1930
      %1932 = vrot.lane.b32.xlu0 %v1335, 24
      %v1933 = vpop.permute.xlu0 %1932
      %1934 = vrot.lane.b32.xlu0 %v1340, 24
      %v1935 = vpop.permute.xlu0 %1934
      %1936 = vrot.lane.b32.xlu0 %v1343, 24
      %v1937 = vpop.permute.xlu0 %1936
      %1938 = vrot.lane.b32.xlu0 %v1348, 24
      %v1939 = vpop.permute.xlu0 %1938
      %1940 = vrot.lane.b32.xlu0 %v1351, 24
      %v1941 = vpop.permute.xlu0 %1940
      %1942 = vrot.lane.b32.xlu0 %v1356, 24
      %v1943 = vpop.permute.xlu0 %1942
      %1944 = vrot.lane.b32.xlu0 %v1359, 24
      %v1945 = vpop.permute.xlu0 %1944
      %1946 = vrot.lane.b32.xlu0 %v1364, 24
      %v1947 = vpop.permute.xlu0 %1946
      %1948 = vrot.lane.b32.xlu0 %v1367, 24
      %v1949 = vpop.permute.xlu0 %1948
      %1950 = vrot.lane.b32.xlu0 %v1372, 24
      %v1951 = vpop.permute.xlu0 %1950
      %1952 = vrot.lane.b32.xlu0 %v1375, 24
      %v1953 = vpop.permute.xlu0 %1952
      %v1986 = vadd.f32 %v1826, %v1891
      %v1987 = vadd.f32 %v1827, %v1893
      %v1988 = vadd.f32 %v1828, %v1895
      %v1989 = vadd.f32 %v1829, %v1897
      %v1990 = vadd.f32 %v1830, %v1899
      %v1991 = vadd.f32 %v1831, %v1901
      %v1992 = vadd.f32 %v1832, %v1903
      %v1993 = vadd.f32 %v1833, %v1905
      %v1994 = vadd.f32 %v1834, %v1907
      %v1995 = vadd.f32 %v1835, %v1909
      %v1996 = vadd.f32 %v1836, %v1911
      %v1997 = vadd.f32 %v1837, %v1913
      %v1998 = vadd.f32 %v1838, %v1915
      %v1999 = vadd.f32 %v1839, %v1917
      %v2000 = vadd.f32 %v1840, %v1919
      %v2001 = vadd.f32 %v1841, %v1921
      %v2002 = vadd.f32 %v1842, %v1923
      %v2003 = vadd.f32 %v1843, %v1925
      %v2004 = vadd.f32 %v1844, %v1927
      %v2005 = vadd.f32 %v1845, %v1929
      %v2006 = vadd.f32 %v1846, %v1931
      %v2007 = vadd.f32 %v1847, %v1933
      %v2008 = vadd.f32 %v1848, %v1935
      %v2009 = vadd.f32 %v1849, %v1937
      %v2010 = vadd.f32 %v1850, %v1939
      %v2011 = vadd.f32 %v1851, %v1941
      %v2012 = vadd.f32 %v1852, %v1943
      %v2013 = vadd.f32 %v1853, %v1945
      %v2014 = vadd.f32 %v1854, %v1947
      %v2015 = vadd.f32 %v1855, %v1949
      %v2016 = vadd.f32 %v1856, %v1951
      %v2017 = vadd.f32 %v1857, %v1953
      %vm2018 = vcmask 64512
      %v2019 = vsel %vm2018, %v704, %v1506
      %v2020 = vsel %vm2018, %v707, %v1507
      %v2021 = vsel %vm2018, %v712, %v1508
      %v2022 = vsel %vm2018, %v715, %v1509
      %v2023 = vsel %vm2018, %v720, %v1510
      %v2024 = vsel %vm2018, %v723, %v1511
      %v2025 = vsel %vm2018, %v728, %v1512
      %v2026 = vsel %vm2018, %v731, %v1513
      %v2027 = vsel %vm2018, %v736, %v1514
      %v2028 = vsel %vm2018, %v739, %v1515
      %v2029 = vsel %vm2018, %v744, %v1516
      %v2030 = vsel %vm2018, %v747, %v1517
      %v2031 = vsel %vm2018, %v752, %v1518
      %v2032 = vsel %vm2018, %v755, %v1519
      %v2033 = vsel %vm2018, %v760, %v1520
      %v2034 = vsel %vm2018, %v763, %v1521
      %v2035 = vsel %vm2018, %v768, %v1522
      %v2036 = vsel %vm2018, %v771, %v1523
      %v2037 = vsel %vm2018, %v776, %v1524
      %v2038 = vsel %vm2018, %v779, %v1525
      %v2039 = vsel %vm2018, %v784, %v1526
      %v2040 = vsel %vm2018, %v787, %v1527
      %v2041 = vsel %vm2018, %v792, %v1528
      %v2042 = vsel %vm2018, %v795, %v1529
      %v2043 = vsel %vm2018, %v800, %v1530
      %v2044 = vsel %vm2018, %v803, %v1531
      %v2045 = vsel %vm2018, %v808, %v1532
      %v2046 = vsel %vm2018, %v811, %v1533
      %v2047 = vsel %vm2018, %v816, %v1534
      %v2048 = vsel %vm2018, %v819, %v1535
      %v2049 = vsel %vm2018, %v824, %v1536
      %v2050 = vsel %vm2018, %v827, %v1537
      %vm2051 = vcmask 130048
      %v2052 = vsel %vm2051, %v2019, %v1666
      %v2053 = vsel %vm2051, %v2020, %v1667
      %v2054 = vsel %vm2051, %v2021, %v1668
      %v2055 = vsel %vm2051, %v2022, %v1669
      %v2056 = vsel %vm2051, %v2023, %v1670
      %v2057 = vsel %vm2051, %v2024, %v1671
      %v2058 = vsel %vm2051, %v2025, %v1672
      %v2059 = vsel %vm2051, %v2026, %v1673
      %v2060 = vsel %vm2051, %v2027, %v1674
      %v2061 = vsel %vm2051, %v2028, %v1675
      %v2062 = vsel %vm2051, %v2029, %v1676
      %v2063 = vsel %vm2051, %v2030, %v1677
      %v2064 = vsel %vm2051, %v2031, %v1678
      %v2065 = vsel %vm2051, %v2032, %v1679
      %v2066 = vsel %vm2051, %v2033, %v1680
      %v2067 = vsel %vm2051, %v2034, %v1681
      %v2068 = vsel %vm2051, %v2035, %v1682
      %v2069 = vsel %vm2051, %v2036, %v1683
      %v2070 = vsel %vm2051, %v2037, %v1684
      %v2071 = vsel %vm2051, %v2038, %v1685
      %v2072 = vsel %vm2051, %v2039, %v1686
      %v2073 = vsel %vm2051, %v2040, %v1687
      %v2074 = vsel %vm2051, %v2041, %v1688
      %v2075 = vsel %vm2051, %v2042, %v1689
      %v2076 = vsel %vm2051, %v2043, %v1690
      %v2077 = vsel %vm2051, %v2044, %v1691
      %v2078 = vsel %vm2051, %v2045, %v1692
      %v2079 = vsel %vm2051, %v2046, %v1693
      %v2080 = vsel %vm2051, %v2047, %v1694
      %v2081 = vsel %vm2051, %v2048, %v1695
      %v2082 = vsel %vm2051, %v2049, %v1696
      %v2083 = vsel %vm2051, %v2050, %v1697
      %vm2084 = vcmask 195584
      %v2085 = vsel %vm2084, %v2052, %v1986
      %v2086 = vsel %vm2084, %v2053, %v1987
      %v2087 = vsel %vm2084, %v2054, %v1988
      %v2088 = vsel %vm2084, %v2055, %v1989
      %v2089 = vsel %vm2084, %v2056, %v1990
      %v2090 = vsel %vm2084, %v2057, %v1991
      %v2091 = vsel %vm2084, %v2058, %v1992
      %v2092 = vsel %vm2084, %v2059, %v1993
      %v2093 = vsel %vm2084, %v2060, %v1994
      %v2094 = vsel %vm2084, %v2061, %v1995
      %v2095 = vsel %vm2084, %v2062, %v1996
      %v2096 = vsel %vm2084, %v2063, %v1997
      %v2097 = vsel %vm2084, %v2064, %v1998
      %v2098 = vsel %vm2084, %v2065, %v1999
      %v2099 = vsel %vm2084, %v2066, %v2000
      %v2100 = vsel %vm2084, %v2067, %v2001
      %v2101 = vsel %vm2084, %v2068, %v2002
      %v2102 = vsel %vm2084, %v2069, %v2003
      %v2103 = vsel %vm2084, %v2070, %v2004
      %v2104 = vsel %vm2084, %v2071, %v2005
      %v2105 = vsel %vm2084, %v2072, %v2006
      %v2106 = vsel %vm2084, %v2073, %v2007
      %v2107 = vsel %vm2084, %v2074, %v2008
      %v2108 = vsel %vm2084, %v2075, %v2009
      %v2109 = vsel %vm2084, %v2076, %v2010
      %v2110 = vsel %vm2084, %v2077, %v2011
      %v2111 = vsel %vm2084, %v2078, %v2012
      %v2112 = vsel %vm2084, %v2079, %v2013
      %v2113 = vsel %vm2084, %v2080, %v2014
      %v2114 = vsel %vm2084, %v2081, %v2015
      %v2115 = vsel %vm2084, %v2082, %v2016
      %v2116 = vsel %vm2084, %v2083, %v2017
      %v2117 = vld [vmem:[%s6] sm:$0x1]
      %v2119 = vlaneseq
      %v2120 = vshrl.u32 %v2119, 7
      %v2121 = vsub.s32 0, %v2120
      %v2122 = vrot.slane %v2117, %v2121
      %v2124 = vadd.f32 %v2085, %v2122
      %v2125 = vadd.f32 %v2086, %v2122
      %v2126 = vadd.f32 %v2087, %v2122
      %v2127 = vadd.f32 %v2088, %v2122
      %v2128 = vadd.f32 %v2089, %v2122
      %v2129 = vadd.f32 %v2090, %v2122
      %v2130 = vadd.f32 %v2091, %v2122
      %v2131 = vadd.f32 %v2092, %v2122
      %v2132 = vadd.f32 %v2093, %v2122
      %v2133 = vadd.f32 %v2094, %v2122
      %v2134 = vadd.f32 %v2095, %v2122
      %v2135 = vadd.f32 %v2096, %v2122
      %v2136 = vadd.f32 %v2097, %v2122
      %v2137 = vadd.f32 %v2098, %v2122
      %v2138 = vadd.f32 %v2099, %v2122
      %v2139 = vadd.f32 %v2100, %v2122
      %v2140 = vadd.f32 %v2101, %v2122
      %v2141 = vadd.f32 %v2102, %v2122
      %v2142 = vadd.f32 %v2103, %v2122
      %v2143 = vadd.f32 %v2104, %v2122
      %v2144 = vadd.f32 %v2105, %v2122
      %v2145 = vadd.f32 %v2106, %v2122
      %v2146 = vadd.f32 %v2107, %v2122
      %v2147 = vadd.f32 %v2108, %v2122
      %v2148 = vadd.f32 %v2109, %v2122
      %v2149 = vadd.f32 %v2110, %v2122
      %v2150 = vadd.f32 %v2111, %v2122
      %v2151 = vadd.f32 %v2112, %v2122
      %v2152 = vadd.f32 %v2113, %v2122
      %v2153 = vadd.f32 %v2114, %v2122
      %v2154 = vadd.f32 %v2115, %v2122
      %v2155 = vadd.f32 %v2116, %v2122
      %v2156 = vmax.f32 %v2124, 0.0
      %v2157 = vmax.f32 %v2125, 0.0
      %v2158 = vmax.f32 %v2126, 0.0
      %v2159 = vmax.f32 %v2127, 0.0
      %v2160 = vmax.f32 %v2128, 0.0
      %v2161 = vmax.f32 %v2129, 0.0
      %v2162 = vmax.f32 %v2130, 0.0
      %v2163 = vmax.f32 %v2131, 0.0
      %v2164 = vmax.f32 %v2132, 0.0
      %v2165 = vmax.f32 %v2133, 0.0
      %v2166 = vmax.f32 %v2134, 0.0
      %v2167 = vmax.f32 %v2135, 0.0
      %v2168 = vmax.f32 %v2136, 0.0
      %v2169 = vmax.f32 %v2137, 0.0
      %v2170 = vmax.f32 %v2138, 0.0
      %v2171 = vmax.f32 %v2139, 0.0
      %v2172 = vmax.f32 %v2140, 0.0
      %v2173 = vmax.f32 %v2141, 0.0
      %v2174 = vmax.f32 %v2142, 0.0
      %v2175 = vmax.f32 %v2143, 0.0
      %v2176 = vmax.f32 %v2144, 0.0
      %v2177 = vmax.f32 %v2145, 0.0
      %v2178 = vmax.f32 %v2146, 0.0
      %v2179 = vmax.f32 %v2147, 0.0
      %v2180 = vmax.f32 %v2148, 0.0
      %v2181 = vmax.f32 %v2149, 0.0
      %v2182 = vmax.f32 %v2150, 0.0
      %v2183 = vmax.f32 %v2151, 0.0
      %v2184 = vmax.f32 %v2152, 0.0
      %v2185 = vmax.f32 %v2153, 0.0
      %v2186 = vmax.f32 %v2154, 0.0
      %v2187 = vmax.f32 %v2155, 0.0
      %v2188 = vpack.c.bf16 %v2157, %v2156
      %v2189 = vpack.c.bf16 %v2159, %v2158
      %v2190 = vpack.c.bf16 %v2161, %v2160
      %v2191 = vpack.c.bf16 %v2163, %v2162
      %v2192 = vpack.c.bf16 %v2165, %v2164
      %v2193 = vpack.c.bf16 %v2167, %v2166
      %v2194 = vpack.c.bf16 %v2169, %v2168
      %v2195 = vpack.c.bf16 %v2171, %v2170
      %v2196 = vpack.c.bf16 %v2173, %v2172
      %v2197 = vpack.c.bf16 %v2175, %v2174
      %v2198 = vpack.c.bf16 %v2177, %v2176
      %v2199 = vpack.c.bf16 %v2179, %v2178
      %v2200 = vpack.c.bf16 %v2181, %v2180
      %v2201 = vpack.c.bf16 %v2183, %v2182
      %v2202 = vpack.c.bf16 %v2185, %v2184
      %v2203 = vpack.c.bf16 %v2187, %v2186
      %v2220 = vunpack.c.l.b16 %v2188
      %v2221 = vunpack.c.h.b16 %v2188
      %v2222 = vunpack.c.l.b16 %v2189
      %v2223 = vunpack.c.h.b16 %v2189
      %v2224 = vunpack.c.l.b16 %v2190
      %v2225 = vunpack.c.h.b16 %v2190
      %v2226 = vunpack.c.l.b16 %v2191
      %v2227 = vunpack.c.h.b16 %v2191
      %v2228 = vunpack.c.l.b16 %v2192
      %v2229 = vunpack.c.h.b16 %v2192
      %v2230 = vunpack.c.l.b16 %v2193
      %v2231 = vunpack.c.h.b16 %v2193
      %v2232 = vunpack.c.l.b16 %v2194
      %v2233 = vunpack.c.h.b16 %v2194
      %v2234 = vunpack.c.l.b16 %v2195
      %v2235 = vunpack.c.h.b16 %v2195
      %v2236 = vunpack.c.l.b16 %v2196
      %v2237 = vunpack.c.h.b16 %v2196
      %v2238 = vunpack.c.l.b16 %v2197
      %v2239 = vunpack.c.h.b16 %v2197
      %v2240 = vunpack.c.l.b16 %v2198
      %v2241 = vunpack.c.h.b16 %v2198
      %v2242 = vunpack.c.l.b16 %v2199
      %v2243 = vunpack.c.h.b16 %v2199
      %v2244 = vunpack.c.l.b16 %v2200
      %v2245 = vunpack.c.h.b16 %v2200
      %v2246 = vunpack.c.l.b16 %v2201
      %v2247 = vunpack.c.h.b16 %v2201
      %v2248 = vunpack.c.l.b16 %v2202
      %v2249 = vunpack.c.h.b16 %v2202
      %v2250 = vunpack.c.l.b16 %v2203
      %v2251 = vunpack.c.h.b16 %v2203
      %v2252 = vpack.c.b16 %v2220, %v2220
      %v2253 = vpack.c.b16 %v2221, %v2221
      %v2254 = vpack.c.b16 %v2222, %v2222
      %v2255 = vpack.c.b16 %v2223, %v2223
      %v2256 = vpack.c.b16 %v2224, %v2224
      %v2257 = vpack.c.b16 %v2225, %v2225
      %v2258 = vpack.c.b16 %v2226, %v2226
      %v2259 = vpack.c.b16 %v2227, %v2227
      %v2260 = vpack.c.b16 %v2228, %v2228
      %v2261 = vpack.c.b16 %v2229, %v2229
      %v2262 = vpack.c.b16 %v2230, %v2230
      %v2263 = vpack.c.b16 %v2231, %v2231
      %v2264 = vpack.c.b16 %v2232, %v2232
      %v2265 = vpack.c.b16 %v2233, %v2233
      %v2266 = vpack.c.b16 %v2234, %v2234
      %v2267 = vpack.c.b16 %v2235, %v2235
      %v2268 = vpack.c.b16 %v2236, %v2236
      %v2269 = vpack.c.b16 %v2237, %v2237
      %v2270 = vpack.c.b16 %v2238, %v2238
      %v2271 = vpack.c.b16 %v2239, %v2239
      %v2272 = vpack.c.b16 %v2240, %v2240
      %v2273 = vpack.c.b16 %v2241, %v2241
      %v2274 = vpack.c.b16 %v2242, %v2242
      %v2275 = vpack.c.b16 %v2243, %v2243
      %v2276 = vpack.c.b16 %v2244, %v2244
      %v2277 = vpack.c.b16 %v2245, %v2245
      %v2278 = vpack.c.b16 %v2246, %v2246
      %v2279 = vpack.c.b16 %v2247, %v2247
      %v2280 = vpack.c.b16 %v2248, %v2248
      %v2281 = vpack.c.b16 %v2249, %v2249
      %v2282 = vpack.c.b16 %v2250, %v2250
      %v2283 = vpack.c.b16 %v2251, %v2251
      %vm2316 = vcmask 257024
      %2317 = vst.msk [vmem:[%s353] sm:$0xf] %vm2316, %v2252
      %2318 = vst.msk [vmem:[%s353 + $0x4] sm:$0xf] %vm2316, %v2253
      %2319 = vst.msk [vmem:[%s353 + $0x8] sm:$0xf] %vm2316, %v2254
      %2320 = vst.msk [vmem:[%s353 + $0xc] sm:$0xf] %vm2316, %v2255
      %2321 = vst.msk [vmem:[%s353 + $0x10] sm:$0xf] %vm2316, %v2256
      %2322 = vst.msk [vmem:[%s353 + $0x14] sm:$0xf] %vm2316, %v2257
      %2323 = vst.msk [vmem:[%s353 + $0x18] sm:$0xf] %vm2316, %v2258
      %2324 = vst.msk [vmem:[%s353 + $0x1c] sm:$0xf] %vm2316, %v2259
      %2325 = vst.msk [vmem:[%s353 + $0x20] sm:$0xf] %vm2316, %v2260
      %2326 = vst.msk [vmem:[%s353 + $0x24] sm:$0xf] %vm2316, %v2261
      %2327 = vst.msk [vmem:[%s353 + $0x28] sm:$0xf] %vm2316, %v2262
      %2328 = vst.msk [vmem:[%s353 + $0x2c] sm:$0xf] %vm2316, %v2263
      %2329 = vst.msk [vmem:[%s353 + $0x30] sm:$0xf] %vm2316, %v2264
      %2330 = vst.msk [vmem:[%s353 + $0x34] sm:$0xf] %vm2316, %v2265
      %2331 = vst.msk [vmem:[%s353 + $0x38] sm:$0xf] %vm2316, %v2266
      %2332 = vst.msk [vmem:[%s353 + $0x3c] sm:$0xf] %vm2316, %v2267
      %2333 = vst.msk [vmem:[%s353 + $0x40] sm:$0xf] %vm2316, %v2268
      %2334 = vst.msk [vmem:[%s353 + $0x44] sm:$0xf] %vm2316, %v2269
      %2335 = vst.msk [vmem:[%s353 + $0x48] sm:$0xf] %vm2316, %v2270
      %2336 = vst.msk [vmem:[%s353 + $0x4c] sm:$0xf] %vm2316, %v2271
      %2337 = vst.msk [vmem:[%s353 + $0x50] sm:$0xf] %vm2316, %v2272
      %2338 = vst.msk [vmem:[%s353 + $0x54] sm:$0xf] %vm2316, %v2273
      %2339 = vst.msk [vmem:[%s353 + $0x58] sm:$0xf] %vm2316, %v2274
      %2340 = vst.msk [vmem:[%s353 + $0x5c] sm:$0xf] %vm2316, %v2275
      %2341 = vst.msk [vmem:[%s353 + $0x60] sm:$0xf] %vm2316, %v2276
      %2342 = vst.msk [vmem:[%s353 + $0x64] sm:$0xf] %vm2316, %v2277
      %2343 = vst.msk [vmem:[%s353 + $0x68] sm:$0xf] %vm2316, %v2278
      %2344 = vst.msk [vmem:[%s353 + $0x6c] sm:$0xf] %vm2316, %v2279
      %2345 = vst.msk [vmem:[%s353 + $0x70] sm:$0xf] %vm2316, %v2280
      %2346 = vst.msk [vmem:[%s353 + $0x74] sm:$0xf] %vm2316, %v2281
      %2347 = vst.msk [vmem:[%s353 + $0x78] sm:$0xf] %vm2316, %v2282
      %2348 = vst.msk [vmem:[%s353 + $0x7c] sm:$0xf] %vm2316, %v2283
      %s2349 = smul.u32 32, %s23
      %p2350 = scmp.lt.s32.totalorder %s22, 1
      %s2351 = scalar_select %p2350, %s22, 1
      %p2352 = scmp.lt.s32.totalorder %s2349, 31
      %s2353 = scalar_select %p2352, %s2349, 31
      %s2354 = smul.addr %s2351, 32
      %s2355 = sadd.s32 %s2353, %s2354
      %s2356 = smul.addr %s2355, 4
      %s2357 = scalar_lea.vmem %s7, %s2356
      // Predicated region
      $region49: #{tpu_custom_call.1} parent=47 // pred_check
        %p2358 = pneg %p211
      $region50: #{tpu_custom_call.1} parent=47 // pred_check_branch
        %2360 = sbr.rel (%p2358) target = $region52
      $region51: #{tpu_custom_call.1} parent=47 // pred_region
        %s2361 = smul.u32 32, %s23
      $region52: #{tpu_custom_call.1} parent=47 // pred_fallthru
        _
    $region48: #{tpu_custom_call.1} parent=5 // pred_fallthru
      _
    %p2362 = scmp.le.s32.totalorder 2, %s13
    // Predicated region
    $region53: #{tpu_custom_call.1} parent=5 // pred_check
      %p2363 = pneg %p2362
    $region54: #{tpu_custom_call.1} parent=5 // pred_check_branch
      %2365 = sbr.rel (%p2363) target = $region56
    $region55: #{tpu_custom_call.1} parent=5 // pred_region
      %s2366 = ssub.s32 %s13, 2
      // Predicated region
      $region57: #{tpu_custom_call.1} parent=55 // pred_check
        %p2367 = pneg %p217
      $region58: #{tpu_custom_call.1} parent=55 // pred_check_branch
        %2369 = sbr.rel (%p2367) target = $region60
      $region59: #{tpu_custom_call.1} parent=55 // pred_region
        %s2370 = smul.u32 32, %s25
        %p2371 = scmp.lt.s32.totalorder %s24, 1
        %s2372 = scalar_select %p2371, %s24, 1
        %p2373 = scmp.lt.s32.totalorder %s2370, 31
        %s2374 = scalar_select %p2373, %s2370, 31
        %s2375 = smul.addr %s2372, 32
        %s2376 = sadd.s32 %s2374, %s2375
        %s2377 = smul.addr %s2376, 4
        %s2378 = scalar_lea.vmem %s7, %s2377
      $region60: #{tpu_custom_call.1} parent=55 // pred_fallthru
        _
    $region56: #{tpu_custom_call.1} parent=5 // pred_fallthru
      _
  $region6: #{tpu_custom_call.1} parent=0 // loop_footer
    %s17 = sadd.s32 1, %s13
  $region7: #{tpu_custom_call.1} parent=0 // loop_footer_branch
    %12 = sbr.rel target = $region3
  $region8: #{tpu_custom_call.1} parent=0 // loop_exit
    _

</llo_original>
